<compile_context>
chip_gen: v5e
topology: v5e:2x2
jax: 0.10.0
libtpu: 0.0.40
codegen_flags: <defaults>
</compile_context>

<pallas_src>
import functools

import jax
import jax.numpy as jnp
from jax.experimental import pallas as pl
from jax.experimental.pallas import tpu as pltpu


# ----------------------------------------------------------------------------
# helpers
# ----------------------------------------------------------------------------
def _round_up(x, m):
    return (x + m - 1) // m * m


def _largest_divisor_leq(n, cap):
    for d in range(min(n, cap), 0, -1):
        if n % d == 0:
            return d
    return 1


def _pick_block(n, cap, mult):
    """Largest divisor of n that is a multiple of `mult` and <= cap."""
    if n <= mult:
        return n
    best = mult
    d = mult
    while d <= min(n, cap):
        if n % d == 0:
            best = d
        d += mult
    return best


# ----------------------------------------------------------------------------
# Pallas kernels
# ----------------------------------------------------------------------------
def _lstm_layer_kernel(x_ref, w_ref, b_ref, h0_ref, c0_ref,
                       y_ref, hN_ref, cN_ref, h_sc, c_sc, *, Tb, H):
    """One LSTM layer, time chunked.

    grid = (T // Tb,); h/c carried in f32 VMEM scratch across chunks.
    x_ref: (Tb, B, Din_pad) bf16   w_ref: (Din_pad + H_pad, 4*H_pad) bf16
    b_ref: (1, 4*H_pad) f32        y_ref: (Tb, B, H_pad) bf16
    """
    chunk = pl.program_id(0)

    @pl.when(chunk == 0)
    def _():
        h_sc[...] = h0_ref[...]
        c_sc[...] = c0_ref[...]

    def step(t, carry):
        x_t = x_ref[t]                                       # (B, Din_pad) bf16
        # Single fused gate matmul on the MXU: [x_t, h] @ W_fused  (f32 accum).
        xh = jnp.concatenate([x_t, h_sc[...].astype(x_t.dtype)], axis=-1)
        gates = (jnp.dot(xh, w_ref[...], preferred_element_type=jnp.float32)
                 + b_ref[...])                               # (B, 4*H_pad) f32

        # Lane-aligned gate slices (H is a multiple of 128). Gate order i,f,g,o.
        i_g = jax.nn.sigmoid(gates[:, 0 * H:1 * H])
        f_g = jax.nn.sigmoid(gates[:, 1 * H:2 * H])
        g_g = jnp.tanh(gates[:, 2 * H:3 * H])
        o_g = jax.nn.sigmoid(gates[:, 3 * H:4 * H])

        c_new = f_g * c_sc[...] + i_g * g_g
        h_new = o_g * jnp.tanh(c_new)
        c_sc[...] = c_new
        h_sc[...] = h_new
        y_ref[t] = h_new.astype(y_ref.dtype)
        return carry

    jax.lax.fori_loop(0, Tb, step, 0, unroll=True)

    @pl.when(chunk == pl.num_programs(0) - 1)
    def _():
        hN_ref[...] = h_sc[...]
        cN_ref[...] = c_sc[...]


def lstm_layer(x, w_fused, b, h0, c0, *, time_chunk=None):
    """x: (T, B_pad, Din_pad) bf16; w_fused: (Din_pad + H_pad, 4*H_pad) bf16;
    b: (1, 4*H_pad) f32; h0, c0: (B_pad, H_pad) f32.
    Returns (y (T, B_pad, H_pad) bf16, h_n, c_n (B_pad, H_pad) f32)."""
    T, B, Din = x.shape
    H = h0.shape[-1]
    if time_chunk is not None and T % time_chunk == 0:
        Tb = time_chunk
    else:
        Tb = _largest_divisor_leq(T, time_chunk or 32)
    n_chunks = T // Tb

    kernel = functools.partial(_lstm_layer_kernel, Tb=Tb, H=H)
    return pl.pallas_call(
        kernel,
        out_shape=(jax.ShapeDtypeStruct((T, B, H), jnp.bfloat16),
                   jax.ShapeDtypeStruct((B, H), jnp.float32),
                   jax.ShapeDtypeStruct((B, H), jnp.float32)),
        grid_spec=pltpu.PrefetchScalarGridSpec(
            num_scalar_prefetch=0,
            grid=(n_chunks,),
            in_specs=[
                pl.BlockSpec((Tb, B, Din), lambda c: (c, 0, 0)),
                pl.BlockSpec(w_fused.shape, lambda c: (0, 0)),   # resident weight
                pl.BlockSpec((1, 4 * H), lambda c: (0, 0)),
                pl.BlockSpec((B, H), lambda c: (0, 0)),
                pl.BlockSpec((B, H), lambda c: (0, 0)),
            ],
            out_specs=(
                pl.BlockSpec((Tb, B, H), lambda c: (c, 0, 0)),
                pl.BlockSpec((B, H), lambda c: (0, 0)),
                pl.BlockSpec((B, H), lambda c: (0, 0)),
            ),
            scratch_shapes=[pltpu.VMEM((B, H), jnp.float32),
                            pltpu.VMEM((B, H), jnp.float32)],
        ),
        compiler_params=pltpu.CompilerParams(
            dimension_semantics=("arbitrary",),          # time is a recurrence
            vmem_limit_bytes=64 * 1024 * 1024,           # sized for v7x VMEM
        ),
    )(x, w_fused, b, h0, c0)


def _decoder_kernel(h_ref, w_ref, b_ref, o_ref):
    o_ref[...] = (jnp.dot(h_ref[...], w_ref[...],
                          preferred_element_type=jnp.float32)
                  + b_ref[...]).astype(o_ref.dtype)


def decoder_matmul(h, w, b):
    """Tiled decoder: h (M, H) bf16 @ w (H, Vp) bf16 + b (1, Vp) -> (M, Vp) f32."""
    M, H = h.shape
    V = w.shape[1]
    tm = _pick_block(M, 256, 8)
    tn = _pick_block(V, 512, 128)
    grid = (M // tm, V // tn)
    return pl.pallas_call(
        _decoder_kernel,
        out_shape=jax.ShapeDtypeStruct((M, V), jnp.float32),
        grid_spec=pltpu.PrefetchScalarGridSpec(
            num_scalar_prefetch=0,
            grid=grid,
            in_specs=[
                pl.BlockSpec((tm, H), lambda m, n: (m, 0)),
                pl.BlockSpec((H, tn), lambda m, n: (0, n)),
                pl.BlockSpec((1, tn), lambda m, n: (0, n)),
            ],
            out_specs=pl.BlockSpec((tm, tn), lambda m, n: (m, n)),
        ),
        compiler_params=pltpu.CompilerParams(
            dimension_semantics=("parallel", "parallel"),
            vmem_limit_bytes=64 * 1024 * 1024,
        ),
    )(h, w, b)


# ----------------------------------------------------------------------------
# Model (parameter construction + forward glue)
# ----------------------------------------------------------------------------
def init_params(key, ntoken, ninp, nhid, nlayers, pad_idx):
    V = ntoken + 1
    initrange = 0.1
    keys = jax.random.split(key, 2 + 4 * nlayers)

    H_pad = _round_up(nhid, 128)
    Vp = _round_up(ntoken, 128)     # only the first ntoken logits are ever kept

    # Encoder (embedding), row pad_idx zeroed (padding_idx semantics).
    enc_w = jax.random.uniform(keys[0], (V, ninp), jnp.float32,
                               -initrange, initrange)
    enc_w = enc_w.at[pad_idx, :].set(0.0)

    # Decoder Linear(nhid, ntoken + 1); reference slices decoded[:, :, :-1],
    # so column `ntoken` (the last) is never computed here.
    dec_w = jax.random.uniform(keys[1], (V, nhid), jnp.float32,
                               -initrange, initrange)
    dec_w = dec_w.at[pad_idx, :].set(0.0)
    dec_wT = jnp.zeros((H_pad, Vp), jnp.float32)
    dec_wT = dec_wT.at[:nhid, :ntoken].set(dec_w.T[:, :ntoken])
    dec_b = jnp.zeros((1, Vp), jnp.float32)          # bias zero-init as in ref

    # Stacked LSTM layers (tie_weights=False -> all hidden sizes = nhid),
    # stored as a single fused, zero-padded, pre-transposed weight per layer.
    lstm = []
    for l in range(nlayers):
        din = ninp if l == 0 else nhid
        din_pad = _round_up(din, 128)
        bound = 1.0 / float(nhid) ** 0.5
        k = keys[2 + 4 * l: 2 + 4 * (l + 1)]
        w_ih = jax.random.uniform(k[0], (4 * nhid, din), jnp.float32, -bound, bound)
        w_hh = jax.random.uniform(k[1], (4 * nhid, nhid), jnp.float32, -bound, bound)
        b_ih = jax.random.uniform(k[2], (4 * nhid,), jnp.float32, -bound, bound)
        b_hh = jax.random.uniform(k[3], (4 * nhid,), jnp.float32, -bound, bound)

        w_ih_t, w_hh_t, bias = w_ih.T, w_hh.T, b_ih + b_hh
        w_f = jnp.zeros((din_pad + H_pad, 4 * H_pad), jnp.float32)
        b_f = jnp.zeros((4 * H_pad,), jnp.float32)
        for g in range(4):                           # gate order i, f, g, o
            w_f = w_f.at[:din, g * H_pad:g * H_pad + nhid].set(
                w_ih_t[:, g * nhid:(g + 1) * nhid])
            w_f = w_f.at[din_pad:din_pad + nhid, g * H_pad:g * H_pad + nhid].set(
                w_hh_t[:, g * nhid:(g + 1) * nhid])
            b_f = b_f.at[g * H_pad:g * H_pad + nhid].set(
                bias[g * nhid:(g + 1) * nhid])
        lstm.append(dict(w=w_f.astype(jnp.bfloat16), b=b_f[None, :]))

    return dict(enc_w=enc_w, dec_wT=dec_wT.astype(jnp.bfloat16),
                dec_b=dec_b, lstm=lstm)


def init_hidden(bsz, nhid, nlayers):
    return [(jnp.zeros((1, bsz, nhid), jnp.float32),
             jnp.zeros((1, bsz, nhid), jnp.float32)) for _ in range(nlayers)]


@functools.partial(jax.jit, static_argnames=("ntoken", "time_chunk"))
def rnn_model_forward(params, tokens, hidden, *, ntoken, time_chunk=None):
    """tokens: (T, B) int32.  Returns (decoded (T, B, ntoken), new_hidden)."""
    T, B = tokens.shape
    nhid = hidden[0][0].shape[-1]
    ninp = params["enc_w"].shape[1]
    B_pad = _round_up(B, 8)
    H_pad = _round_up(nhid, 128)
    Din_pad = _round_up(ninp, 128)

    # Encoder (embedding gather) -- glue, plain JAX.
    # LockedDropout(dropouti) -> identity at inference.
    emb = jnp.take(params["enc_w"], tokens, axis=0)          # (T, B, ninp)
    x = jnp.zeros((T, B_pad, Din_pad), jnp.bfloat16)
    x = x.at[:, :B, :ninp].set(emb.astype(jnp.bfloat16))

    new_hidden = []
    for l, layer in enumerate(params["lstm"]):
        h0 = jnp.zeros((B_pad, H_pad), jnp.float32).at[:B, :nhid].set(hidden[l][0][0])
        c0 = jnp.zeros((B_pad, H_pad), jnp.float32).at[:B, :nhid].set(hidden[l][1][0])
        x, h_n, c_n = lstm_layer(x, layer["w"], layer["b"], h0, c0,
                                 time_chunk=time_chunk)
        new_hidden.append((h_n[:B, :nhid][None], c_n[:B, :nhid][None]))
        # inter-layer LockedDropout(dropouth) -> identity at inference.

    # final LockedDropout(dropout) -> identity at inference.
    flat = x.reshape(T * B_pad, H_pad)
    logits = decoder_matmul(flat, params["dec_wT"], params["dec_b"])
    logits = logits.reshape(T, B_pad, -1)
    decoded = logits[:, :B, :ntoken]     # == reference's decoded[:, :, :-1]
    return decoded, new_hidden


# ----------------------------------------------------------------------------
if __name__ == "__main__":
    ntoken, ninp, nhid, nlayers = 50, 32, 32, 2
    pad_idx = 0
    T, B = 8, 2

    key = jax.random.PRNGKey(0)
    k_param, k_tok = jax.random.split(key)

    params = init_params(k_param, ntoken, ninp, nhid, nlayers, pad_idx)
    tokens = jax.random.randint(k_tok, (T, B), 1, ntoken + 1, dtype=jnp.int32)
    hidden = init_hidden(B, nhid, nlayers)

    decoded, new_hidden = rnn_model_forward(params, tokens, hidden,
                                            ntoken=ntoken, time_chunk=4)
    jax.block_until_ready(decoded)
    jax.block_until_ready(new_hidden)

    assert decoded.shape == (T, B, ntoken)
    assert new_hidden[0][0].shape == (1, B, nhid)
    assert new_hidden[-1][1].shape == (1, B, nhid)
    assert bool(jnp.all(jnp.isfinite(decoded)))
    print("KERNEL_OK")
</pallas_src>

<mosaic_0001>
module attributes {stable_mosaic.version = 11 : i64} {
  func.func @_decoder_kernel(%arg0: i32, %arg1: i32, %arg2: memref<64x128xbf16, #tpu.memory_space<vmem>>, %arg3: memref<128x128xbf16, #tpu.memory_space<vmem>>, %arg4: memref<1x128xf32, #tpu.memory_space<vmem>>, %arg5: memref<64x128xf32, #tpu.memory_space<vmem>>) attributes {dimension_semantics = [#tpu.dimension_semantics<parallel>, #tpu.dimension_semantics<parallel>], iteration_bounds = array<i64: 1, 1>, scalar_prefetch = 0 : i64, scratch_operands = 0 : i64, tpu.core_type = #tpu.core_type<tc>, window_params = [{transform_indices = @transform_0, window_bounds = array<i64: 64, 128>}, {transform_indices = @transform_1, window_bounds = array<i64: 128, 128>}, {transform_indices = @transform_2, window_bounds = array<i64: 1, 128>}, {transform_indices = @transform_3, window_bounds = array<i64: 64, 128>}]} {
    %c0 = arith.constant 0 : index
    %c0_0 = arith.constant 0 : index
    %0 = vector.load %arg2[%c0, %c0_0] : memref<64x128xbf16, #tpu.memory_space<vmem>>, vector<64x128xbf16>
    %c0_1 = arith.constant 0 : index
    %c0_2 = arith.constant 0 : index
    %1 = vector.load %arg3[%c0_1, %c0_2] : memref<128x128xbf16, #tpu.memory_space<vmem>>, vector<128x128xbf16>
    %cst = arith.constant dense<0.000000e+00> : vector<64x128xf32>
    %2 = tpu.matmul %0, %1, %cst {dimension_numbers = #tpu.dot_dimension_numbers<[1], [0], [0], [1], [0, 0, 1, 1], [], []>} : vector<64x128xbf16>, vector<128x128xbf16>, vector<64x128xf32> -> vector<64x128xf32>
    %c0_3 = arith.constant 0 : index
    %c0_4 = arith.constant 0 : index
    %3 = vector.load %arg4[%c0_3, %c0_4] : memref<1x128xf32, #tpu.memory_space<vmem>>, vector<1x128xf32>
    %4 = vector.broadcast %3 : vector<1x128xf32> to vector<64x128xf32>
    %5 = arith.addf %2, %4 : vector<64x128xf32>
    %c0_5 = arith.constant 0 : index
    %c0_6 = arith.constant 0 : index
    %6 = vector.load %arg5[%c0_5, %c0_6] : memref<64x128xf32, #tpu.memory_space<vmem>>, vector<64x128xf32>
    tpu.vector_store %arg5[%c0_5, %c0_6], %5 {strides = array<i32>} : memref<64x128xf32, #tpu.memory_space<vmem>>, vector<64x128xf32>,
    return
  }
  func.func @transform_0(%arg0: i32, %arg1: i32) -> (i32, i32) {
    %c0_i32 = arith.constant 0 : i32
    %c0_i32_0 = arith.constant 0 : i32
    return %arg0, %c0_i32 : i32, i32
  }
  func.func @transform_1(%arg0: i32, %arg1: i32) -> (i32, i32) {
    %c0_i32 = arith.constant 0 : i32
    %c0_i32_0 = arith.constant 0 : i32
    return %c0_i32, %arg1 : i32, i32
  }
  func.func @transform_2(%arg0: i32, %arg1: i32) -> (i32, i32) {
    %c0_i32 = arith.constant 0 : i32
    %c0_i32_0 = arith.constant 0 : i32
    return %c0_i32, %arg1 : i32, i32
  }
  func.func @transform_3(%arg0: i32, %arg1: i32) -> (i32, i32) {
    %c0_i32 = arith.constant 0 : i32
    return %arg0, %arg1 : i32, i32
  }
}

module attributes {stable_mosaic.version = 11 : i64} {
  func.func @_lstm_layer_kernel(%arg0: i32, %arg1: memref<4x8x128xbf16, #tpu.memory_space<vmem>>, %arg2: memref<256x512xbf16, #tpu.memory_space<vmem>>, %arg3: memref<1x512xf32, #tpu.memory_space<vmem>>, %arg4: memref<8x128xf32, #tpu.memory_space<vmem>>, %arg5: memref<8x128xf32, #tpu.memory_space<vmem>>, %arg6: memref<4x8x128xbf16, #tpu.memory_space<vmem>>, %arg7: memref<8x128xf32, #tpu.memory_space<vmem>>, %arg8: memref<8x128xf32, #tpu.memory_space<vmem>>, %arg9: memref<8x128xf32, #tpu.memory_space<vmem>>, %arg10: memref<8x128xf32, #tpu.memory_space<vmem>>) attributes {dimension_semantics = [#tpu.dimension_semantics<arbitrary>], iteration_bounds = array<i64: 2>, scalar_prefetch = 0 : i64, scratch_operands = 2 : i64, tpu.core_type = #tpu.core_type<tc>, window_params = [{transform_indices = @transform_0, window_bounds = array<i64: 4, 8, 128>}, {pipeline_mode = #tpu.pipeline_mode<synchronous>, transform_indices = @transform_1, window_bounds = array<i64: 256, 512>}, {pipeline_mode = #tpu.pipeline_mode<synchronous>, transform_indices = @transform_2, window_bounds = array<i64: 1, 512>}, {pipeline_mode = #tpu.pipeline_mode<synchronous>, transform_indices = @transform_3, window_bounds = array<i64: 8, 128>}, {pipeline_mode = #tpu.pipeline_mode<synchronous>, transform_indices = @transform_4, window_bounds = array<i64: 8, 128>}, {transform_indices = @transform_5, window_bounds = array<i64: 4, 8, 128>}, {pipeline_mode = #tpu.pipeline_mode<synchronous>, transform_indices = @transform_6, window_bounds = array<i64: 8, 128>}, {pipeline_mode = #tpu.pipeline_mode<synchronous>, transform_indices = @transform_7, window_bounds = array<i64: 8, 128>}]} {
    %c0_i32 = arith.constant 0 : i32
    %0 = arith.cmpi eq, %arg0, %c0_i32 : i32
    %1 = arith.extui %0 : i1 to i32
    %c0_i32_0 = arith.constant 0 : i32
    %2 = arith.cmpi ne, %1, %c0_i32_0 : i32
    scf.if %2 {
      %c0_82 = arith.constant 0 : index
      %c0_83 = arith.constant 0 : index
      %182 = vector.load %arg4[%c0_82, %c0_83] : memref<8x128xf32, #tpu.memory_space<vmem>>, vector<8x128xf32>
      %c0_84 = arith.constant 0 : index
      %c0_85 = arith.constant 0 : index
      %183 = vector.load %arg9[%c0_84, %c0_85] : memref<8x128xf32, #tpu.memory_space<vmem>>, vector<8x128xf32>
      tpu.vector_store %arg9[%c0_84, %c0_85], %182 {strides = array<i32>} : memref<8x128xf32, #tpu.memory_space<vmem>>, vector<8x128xf32>,
      %c0_86 = arith.constant 0 : index
      %c0_87 = arith.constant 0 : index
      %184 = vector.load %arg5[%c0_86, %c0_87] : memref<8x128xf32, #tpu.memory_space<vmem>>, vector<8x128xf32>
      %c0_88 = arith.constant 0 : index
      %c0_89 = arith.constant 0 : index
      %185 = vector.load %arg10[%c0_88, %c0_89] : memref<8x128xf32, #tpu.memory_space<vmem>>, vector<8x128xf32>
      tpu.vector_store %arg10[%c0_88, %c0_89], %184 {strides = array<i32>} : memref<8x128xf32, #tpu.memory_space<vmem>>, vector<8x128xf32>,
    } else {
    }
    %c0_i32_1 = arith.constant 0 : i32
    %3 = arith.index_cast %c0_i32_1 : i32 to index
    %c0 = arith.constant 0 : index
    %c0_2 = arith.constant 0 : index
    %4 = vector.load %arg1[%3, %c0, %c0_2] : memref<4x8x128xbf16, #tpu.memory_space<vmem>>, vector<1x8x128xbf16>
    %5 = vector.shape_cast %4 : vector<1x8x128xbf16> to vector<8x128xbf16>
    %c0_3 = arith.constant 0 : index
    %c0_4 = arith.constant 0 : index
    %6 = vector.load %arg9[%c0_3, %c0_4] : memref<8x128xf32, #tpu.memory_space<vmem>>, vector<8x128xf32>
    %7 = arith.truncf %6 : vector<8x128xf32> to vector<8x128xbf16>
    %8 = tpu.concatenate %5, %7 in 1 : vector<8x128xbf16>, vector<8x128xbf16> -> vector<8x256xbf16>
    %c0_5 = arith.constant 0 : index
    %c0_6 = arith.constant 0 : index
    %9 = vector.load %arg2[%c0_5, %c0_6] : memref<256x512xbf16, #tpu.memory_space<vmem>>, vector<256x512xbf16>
    %cst = arith.constant dense<0.000000e+00> : vector<8x512xf32>
    %10 = tpu.matmul %8, %9, %cst {dimension_numbers = #tpu.dot_dimension_numbers<[1], [0], [0], [1], [0, 0, 1, 1], [], []>} : vector<8x256xbf16>, vector<256x512xbf16>, vector<8x512xf32> -> vector<8x512xf32>
    %c0_7 = arith.constant 0 : index
    %c0_8 = arith.constant 0 : index
    %11 = vector.load %arg3[%c0_7, %c0_8] : memref<1x512xf32, #tpu.memory_space<vmem>>, vector<1x512xf32>
    %12 = vector.broadcast %11 : vector<1x512xf32> to vector<8x512xf32>
    %13 = arith.addf %10, %12 : vector<8x512xf32>
    %14 = vector.extract_strided_slice %13 {offsets = [0, 0], sizes = [8, 128], strides = [1, 1]} : vector<8x512xf32> to vector<8x128xf32>
    %15 = arith.negf %14 : vector<8x128xf32>
    %16 = math.exp %15 : vector<8x128xf32>
    %cst_9 = arith.constant 1.000000e+00 : f32
    %17 = vector.broadcast %cst_9 : f32 to vector<8x128xf32>
    %18 = arith.addf %17, %16 : vector<8x128xf32>
    %19 = arith.divf %17, %18 : vector<8x128xf32>
    %20 = vector.extract_strided_slice %13 {offsets = [0, 128], sizes = [8, 128], strides = [1, 1]} : vector<8x512xf32> to vector<8x128xf32>
    %21 = arith.negf %20 : vector<8x128xf32>
    %22 = math.exp %21 : vector<8x128xf32>
    %cst_10 = arith.constant 1.000000e+00 : f32
    %23 = vector.broadcast %cst_10 : f32 to vector<8x128xf32>
    %24 = arith.addf %23, %22 : vector<8x128xf32>
    %25 = arith.divf %23, %24 : vector<8x128xf32>
    %26 = vector.extract_strided_slice %13 {offsets = [0, 256], sizes = [8, 128], strides = [1, 1]} : vector<8x512xf32> to vector<8x128xf32>
    %27 = math.tanh %26 : vector<8x128xf32>
    %28 = vector.extract_strided_slice %13 {offsets = [0, 384], sizes = [8, 128], strides = [1, 1]} : vector<8x512xf32> to vector<8x128xf32>
    %29 = arith.negf %28 : vector<8x128xf32>
    %30 = math.exp %29 : vector<8x128xf32>
    %cst_11 = arith.constant 1.000000e+00 : f32
    %31 = vector.broadcast %cst_11 : f32 to vector<8x128xf32>
    %32 = arith.addf %31, %30 : vector<8x128xf32>
    %33 = arith.divf %31, %32 : vector<8x128xf32>
    %c0_12 = arith.constant 0 : index
    %c0_13 = arith.constant 0 : index
    %34 = vector.load %arg10[%c0_12, %c0_13] : memref<8x128xf32, #tpu.memory_space<vmem>>, vector<8x128xf32>
    %35 = arith.mulf %25, %34 : vector<8x128xf32>
    %36 = arith.mulf %19, %27 : vector<8x128xf32>
    %37 = arith.addf %35, %36 : vector<8x128xf32>
    %38 = math.tanh %37 : vector<8x128xf32>
    %39 = arith.mulf %33, %38 : vector<8x128xf32>
    %c0_14 = arith.constant 0 : index
    %c0_15 = arith.constant 0 : index
    %40 = vector.load %arg10[%c0_14, %c0_15] : memref<8x128xf32, #tpu.memory_space<vmem>>, vector<8x128xf32>
    tpu.vector_store %arg10[%c0_14, %c0_15], %37 {strides = array<i32>} : memref<8x128xf32, #tpu.memory_space<vmem>>, vector<8x128xf32>,
    %c0_16 = arith.constant 0 : index
    %c0_17 = arith.constant 0 : index
    %41 = vector.load %arg9[%c0_16, %c0_17] : memref<8x128xf32, #tpu.memory_space<vmem>>, vector<8x128xf32>
    tpu.vector_store %arg9[%c0_16, %c0_17], %39 {strides = array<i32>} : memref<8x128xf32, #tpu.memory_space<vmem>>, vector<8x128xf32>,
    %42 = arith.truncf %39 : vector<8x128xf32> to vector<8x128xbf16>
    %43 = arith.index_cast %c0_i32_1 : i32 to index
    %c0_18 = arith.constant 0 : index
    %c0_19 = arith.constant 0 : index
    %44 = vector.load %arg6[%43, %c0_18, %c0_19] : memref<4x8x128xbf16, #tpu.memory_space<vmem>>, vector<1x8x128xbf16>
    %45 = vector.shape_cast %44 : vector<1x8x128xbf16> to vector<8x128xbf16>
    %46 = vector.shape_cast %42 : vector<8x128xbf16> to vector<1x8x128xbf16>
    tpu.vector_store %arg6[%43, %c0_18, %c0_19], %46 {strides = array<i32>} : memref<4x8x128xbf16, #tpu.memory_space<vmem>>, vector<1x8x128xbf16>,
    %c1_i32 = arith.constant 1 : i32
    %47 = arith.index_cast %c1_i32 : i32 to index
    %c0_20 = arith.constant 0 : index
    %c0_21 = arith.constant 0 : index
    %48 = vector.load %arg1[%47, %c0_20, %c0_21] : memref<4x8x128xbf16, #tpu.memory_space<vmem>>, vector<1x8x128xbf16>
    %49 = vector.shape_cast %48 : vector<1x8x128xbf16> to vector<8x128xbf16>
    %c0_22 = arith.constant 0 : index
    %c0_23 = arith.constant 0 : index
    %50 = vector.load %arg9[%c0_22, %c0_23] : memref<8x128xf32, #tpu.memory_space<vmem>>, vector<8x128xf32>
    %51 = arith.truncf %50 : vector<8x128xf32> to vector<8x128xbf16>
    %52 = tpu.concatenate %49, %51 in 1 : vector<8x128xbf16>, vector<8x128xbf16> -> vector<8x256xbf16>
    %c0_24 = arith.constant 0 : index
    %c0_25 = arith.constant 0 : index
    %53 = vector.load %arg2[%c0_24, %c0_25] : memref<256x512xbf16, #tpu.memory_space<vmem>>, vector<256x512xbf16>
    %cst_26 = arith.constant dense<0.000000e+00> : vector<8x512xf32>
    %54 = tpu.matmul %52, %53, %cst_26 {dimension_numbers = #tpu.dot_dimension_numbers<[1], [0], [0], [1], [0, 0, 1, 1], [], []>} : vector<8x256xbf16>, vector<256x512xbf16>, vector<8x512xf32> -> vector<8x512xf32>
    %c0_27 = arith.constant 0 : index
    %c0_28 = arith.constant 0 : index
    %55 = vector.load %arg3[%c0_27, %c0_28] : memref<1x512xf32, #tpu.memory_space<vmem>>, vector<1x512xf32>
    %56 = vector.broadcast %55 : vector<1x512xf32> to vector<8x512xf32>
    %57 = arith.addf %54, %56 : vector<8x512xf32>
    %58 = vector.extract_strided_slice %57 {offsets = [0, 0], sizes = [8, 128], strides = [1, 1]} : vector<8x512xf32> to vector<8x128xf32>
    %59 = arith.negf %58 : vector<8x128xf32>
    %60 = math.exp %59 : vector<8x128xf32>
    %cst_29 = arith.constant 1.000000e+00 : f32
    %61 = vector.broadcast %cst_29 : f32 to vector<8x128xf32>
    %62 = arith.addf %61, %60 : vector<8x128xf32>
    %63 = arith.divf %61, %62 : vector<8x128xf32>
    %64 = vector.extract_strided_slice %57 {offsets = [0, 128], sizes = [8, 128], strides = [1, 1]} : vector<8x512xf32> to vector<8x128xf32>
    %65 = arith.negf %64 : vector<8x128xf32>
    %66 = math.exp %65 : vector<8x128xf32>
    %cst_30 = arith.constant 1.000000e+00 : f32
    %67 = vector.broadcast %cst_30 : f32 to vector<8x128xf32>
    %68 = arith.addf %67, %66 : vector<8x128xf32>
    %69 = arith.divf %67, %68 : vector<8x128xf32>
    %70 = vector.extract_strided_slice %57 {offsets = [0, 256], sizes = [8, 128], strides = [1, 1]} : vector<8x512xf32> to vector<8x128xf32>
    %71 = math.tanh %70 : vector<8x128xf32>
    %72 = vector.extract_strided_slice %57 {offsets = [0, 384], sizes = [8, 128], strides = [1, 1]} : vector<8x512xf32> to vector<8x128xf32>
    %73 = arith.negf %72 : vector<8x128xf32>
    %74 = math.exp %73 : vector<8x128xf32>
    %cst_31 = arith.constant 1.000000e+00 : f32
    %75 = vector.broadcast %cst_31 : f32 to vector<8x128xf32>
    %76 = arith.addf %75, %74 : vector<8x128xf32>
    %77 = arith.divf %75, %76 : vector<8x128xf32>
    %c0_32 = arith.constant 0 : index
    %c0_33 = arith.constant 0 : index
    %78 = vector.load %arg10[%c0_32, %c0_33] : memref<8x128xf32, #tpu.memory_space<vmem>>, vector<8x128xf32>
    %79 = arith.mulf %69, %78 : vector<8x128xf32>
    %80 = arith.mulf %63, %71 : vector<8x128xf32>
    %81 = arith.addf %79, %80 : vector<8x128xf32>
    %82 = math.tanh %81 : vector<8x128xf32>
    %83 = arith.mulf %77, %82 : vector<8x128xf32>
    %c0_34 = arith.constant 0 : index
    %c0_35 = arith.constant 0 : index
    %84 = vector.load %arg10[%c0_34, %c0_35] : memref<8x128xf32, #tpu.memory_space<vmem>>, vector<8x128xf32>
    tpu.vector_store %arg10[%c0_34, %c0_35], %81 {strides = array<i32>} : memref<8x128xf32, #tpu.memory_space<vmem>>, vector<8x128xf32>,
    %c0_36 = arith.constant 0 : index
    %c0_37 = arith.constant 0 : index
    %85 = vector.load %arg9[%c0_36, %c0_37] : memref<8x128xf32, #tpu.memory_space<vmem>>, vector<8x128xf32>
    tpu.vector_store %arg9[%c0_36, %c0_37], %83 {strides = array<i32>} : memref<8x128xf32, #tpu.memory_space<vmem>>, vector<8x128xf32>,
    %86 = arith.truncf %83 : vector<8x128xf32> to vector<8x128xbf16>
    %87 = arith.index_cast %c1_i32 : i32 to index
    %c0_38 = arith.constant 0 : index
    %c0_39 = arith.constant 0 : index
    %88 = vector.load %arg6[%87, %c0_38, %c0_39] : memref<4x8x128xbf16, #tpu.memory_space<vmem>>, vector<1x8x128xbf16>
    %89 = vector.shape_cast %88 : vector<1x8x128xbf16> to vector<8x128xbf16>
    %90 = vector.shape_cast %86 : vector<8x128xbf16> to vector<1x8x128xbf16>
    tpu.vector_store %arg6[%87, %c0_38, %c0_39], %90 {strides = array<i32>} : memref<4x8x128xbf16, #tpu.memory_space<vmem>>, vector<1x8x128xbf16>,
    %c2_i32 = arith.constant 2 : i32
    %91 = arith.index_cast %c2_i32 : i32 to index
    %c0_40 = arith.constant 0 : index
    %c0_41 = arith.constant 0 : index
    %92 = vector.load %arg1[%91, %c0_40, %c0_41] : memref<4x8x128xbf16, #tpu.memory_space<vmem>>, vector<1x8x128xbf16>
    %93 = vector.shape_cast %92 : vector<1x8x128xbf16> to vector<8x128xbf16>
    %c0_42 = arith.constant 0 : index
    %c0_43 = arith.constant 0 : index
    %94 = vector.load %arg9[%c0_42, %c0_43] : memref<8x128xf32, #tpu.memory_space<vmem>>, vector<8x128xf32>
    %95 = arith.truncf %94 : vector<8x128xf32> to vector<8x128xbf16>
    %96 = tpu.concatenate %93, %95 in 1 : vector<8x128xbf16>, vector<8x128xbf16> -> vector<8x256xbf16>
    %c0_44 = arith.constant 0 : index
    %c0_45 = arith.constant 0 : index
    %97 = vector.load %arg2[%c0_44, %c0_45] : memref<256x512xbf16, #tpu.memory_space<vmem>>, vector<256x512xbf16>
    %cst_46 = arith.constant dense<0.000000e+00> : vector<8x512xf32>
    %98 = tpu.matmul %96, %97, %cst_46 {dimension_numbers = #tpu.dot_dimension_numbers<[1], [0], [0], [1], [0, 0, 1, 1], [], []>} : vector<8x256xbf16>, vector<256x512xbf16>, vector<8x512xf32> -> vector<8x512xf32>
    %c0_47 = arith.constant 0 : index
    %c0_48 = arith.constant 0 : index
    %99 = vector.load %arg3[%c0_47, %c0_48] : memref<1x512xf32, #tpu.memory_space<vmem>>, vector<1x512xf32>
    %100 = vector.broadcast %99 : vector<1x512xf32> to vector<8x512xf32>
    %101 = arith.addf %98, %100 : vector<8x512xf32>
    %102 = vector.extract_strided_slice %101 {offsets = [0, 0], sizes = [8, 128], strides = [1, 1]} : vector<8x512xf32> to vector<8x128xf32>
    %103 = arith.negf %102 : vector<8x128xf32>
    %104 = math.exp %103 : vector<8x128xf32>
    %cst_49 = arith.constant 1.000000e+00 : f32
    %105 = vector.broadcast %cst_49 : f32 to vector<8x128xf32>
    %106 = arith.addf %105, %104 : vector<8x128xf32>
    %107 = arith.divf %105, %106 : vector<8x128xf32>
    %108 = vector.extract_strided_slice %101 {offsets = [0, 128], sizes = [8, 128], strides = [1, 1]} : vector<8x512xf32> to vector<8x128xf32>
    %109 = arith.negf %108 : vector<8x128xf32>
    %110 = math.exp %109 : vector<8x128xf32>
    %cst_50 = arith.constant 1.000000e+00 : f32
    %111 = vector.broadcast %cst_50 : f32 to vector<8x128xf32>
    %112 = arith.addf %111, %110 : vector<8x128xf32>
    %113 = arith.divf %111, %112 : vector<8x128xf32>
    %114 = vector.extract_strided_slice %101 {offsets = [0, 256], sizes = [8, 128], strides = [1, 1]} : vector<8x512xf32> to vector<8x128xf32>
    %115 = math.tanh %114 : vector<8x128xf32>
    %116 = vector.extract_strided_slice %101 {offsets = [0, 384], sizes = [8, 128], strides = [1, 1]} : vector<8x512xf32> to vector<8x128xf32>
    %117 = arith.negf %116 : vector<8x128xf32>
    %118 = math.exp %117 : vector<8x128xf32>
    %cst_51 = arith.constant 1.000000e+00 : f32
    %119 = vector.broadcast %cst_51 : f32 to vector<8x128xf32>
    %120 = arith.addf %119, %118 : vector<8x128xf32>
    %121 = arith.divf %119, %120 : vector<8x128xf32>
    %c0_52 = arith.constant 0 : index
    %c0_53 = arith.constant 0 : index
    %122 = vector.load %arg10[%c0_52, %c0_53] : memref<8x128xf32, #tpu.memory_space<vmem>>, vector<8x128xf32>
    %123 = arith.mulf %113, %122 : vector<8x128xf32>
    %124 = arith.mulf %107, %115 : vector<8x128xf32>
    %125 = arith.addf %123, %124 : vector<8x128xf32>
    %126 = math.tanh %125 : vector<8x128xf32>
    %127 = arith.mulf %121, %126 : vector<8x128xf32>
    %c0_54 = arith.constant 0 : index
    %c0_55 = arith.constant 0 : index
    %128 = vector.load %arg10[%c0_54, %c0_55] : memref<8x128xf32, #tpu.memory_space<vmem>>, vector<8x128xf32>
    tpu.vector_store %arg10[%c0_54, %c0_55], %125 {strides = array<i32>} : memref<8x128xf32, #tpu.memory_space<vmem>>, vector<8x128xf32>,
    %c0_56 = arith.constant 0 : index
    %c0_57 = arith.constant 0 : index
    %129 = vector.load %arg9[%c0_56, %c0_57] : memref<8x128xf32, #tpu.memory_space<vmem>>, vector<8x128xf32>
    tpu.vector_store %arg9[%c0_56, %c0_57], %127 {strides = array<i32>} : memref<8x128xf32, #tpu.memory_space<vmem>>, vector<8x128xf32>,
    %130 = arith.truncf %127 : vector<8x128xf32> to vector<8x128xbf16>
    %131 = arith.index_cast %c2_i32 : i32 to index
    %c0_58 = arith.constant 0 : index
    %c0_59 = arith.constant 0 : index
    %132 = vector.load %arg6[%131, %c0_58, %c0_59] : memref<4x8x128xbf16, #tpu.memory_space<vmem>>, vector<1x8x128xbf16>
    %133 = vector.shape_cast %132 : vector<1x8x128xbf16> to vector<8x128xbf16>
    %134 = vector.shape_cast %130 : vector<8x128xbf16> to vector<1x8x128xbf16>
    tpu.vector_store %arg6[%131, %c0_58, %c0_59], %134 {strides = array<i32>} : memref<4x8x128xbf16, #tpu.memory_space<vmem>>, vector<1x8x128xbf16>,
    %c3_i32 = arith.constant 3 : i32
    %135 = arith.index_cast %c3_i32 : i32 to index
    %c0_60 = arith.constant 0 : index
    %c0_61 = arith.constant 0 : index
    %136 = vector.load %arg1[%135, %c0_60, %c0_61] : memref<4x8x128xbf16, #tpu.memory_space<vmem>>, vector<1x8x128xbf16>
    %137 = vector.shape_cast %136 : vector<1x8x128xbf16> to vector<8x128xbf16>
    %c0_62 = arith.constant 0 : index
    %c0_63 = arith.constant 0 : index
    %138 = vector.load %arg9[%c0_62, %c0_63] : memref<8x128xf32, #tpu.memory_space<vmem>>, vector<8x128xf32>
    %139 = arith.truncf %138 : vector<8x128xf32> to vector<8x128xbf16>
    %140 = tpu.concatenate %137, %139 in 1 : vector<8x128xbf16>, vector<8x128xbf16> -> vector<8x256xbf16>
    %c0_64 = arith.constant 0 : index
    %c0_65 = arith.constant 0 : index
    %141 = vector.load %arg2[%c0_64, %c0_65] : memref<256x512xbf16, #tpu.memory_space<vmem>>, vector<256x512xbf16>
    %cst_66 = arith.constant dense<0.000000e+00> : vector<8x512xf32>
    %142 = tpu.matmul %140, %141, %cst_66 {dimension_numbers = #tpu.dot_dimension_numbers<[1], [0], [0], [1], [0, 0, 1, 1], [], []>} : vector<8x256xbf16>, vector<256x512xbf16>, vector<8x512xf32> -> vector<8x512xf32>
    %c0_67 = arith.constant 0 : index
    %c0_68 = arith.constant 0 : index
    %143 = vector.load %arg3[%c0_67, %c0_68] : memref<1x512xf32, #tpu.memory_space<vmem>>, vector<1x512xf32>
    %144 = vector.broadcast %143 : vector<1x512xf32> to vector<8x512xf32>
    %145 = arith.addf %142, %144 : vector<8x512xf32>
    %146 = vector.extract_strided_slice %145 {offsets = [0, 0], sizes = [8, 128], strides = [1, 1]} : vector<8x512xf32> to vector<8x128xf32>
    %147 = arith.negf %146 : vector<8x128xf32>
    %148 = math.exp %147 : vector<8x128xf32>
    %cst_69 = arith.constant 1.000000e+00 : f32
    %149 = vector.broadcast %cst_69 : f32 to vector<8x128xf32>
    %150 = arith.addf %149, %148 : vector<8x128xf32>
    %151 = arith.divf %149, %150 : vector<8x128xf32>
    %152 = vector.extract_strided_slice %145 {offsets = [0, 128], sizes = [8, 128], strides = [1, 1]} : vector<8x512xf32> to vector<8x128xf32>
    %153 = arith.negf %152 : vector<8x128xf32>
    %154 = math.exp %153 : vector<8x128xf32>
    %cst_70 = arith.constant 1.000000e+00 : f32
    %155 = vector.broadcast %cst_70 : f32 to vector<8x128xf32>
    %156 = arith.addf %155, %154 : vector<8x128xf32>
    %157 = arith.divf %155, %156 : vector<8x128xf32>
    %158 = vector.extract_strided_slice %145 {offsets = [0, 256], sizes = [8, 128], strides = [1, 1]} : vector<8x512xf32> to vector<8x128xf32>
    %159 = math.tanh %158 : vector<8x128xf32>
    %160 = vector.extract_strided_slice %145 {offsets = [0, 384], sizes = [8, 128], strides = [1, 1]} : vector<8x512xf32> to vector<8x128xf32>
    %161 = arith.negf %160 : vector<8x128xf32>
    %162 = math.exp %161 : vector<8x128xf32>
    %cst_71 = arith.constant 1.000000e+00 : f32
    %163 = vector.broadcast %cst_71 : f32 to vector<8x128xf32>
    %164 = arith.addf %163, %162 : vector<8x128xf32>
    %165 = arith.divf %163, %164 : vector<8x128xf32>
    %c0_72 = arith.constant 0 : index
    %c0_73 = arith.constant 0 : index
    %166 = vector.load %arg10[%c0_72, %c0_73] : memref<8x128xf32, #tpu.memory_space<vmem>>, vector<8x128xf32>
    %167 = arith.mulf %157, %166 : vector<8x128xf32>
    %168 = arith.mulf %151, %159 : vector<8x128xf32>
    %169 = arith.addf %167, %168 : vector<8x128xf32>
    %170 = math.tanh %169 : vector<8x128xf32>
    %171 = arith.mulf %165, %170 : vector<8x128xf32>
    %c0_74 = arith.constant 0 : index
    %c0_75 = arith.constant 0 : index
    %172 = vector.load %arg10[%c0_74, %c0_75] : memref<8x128xf32, #tpu.memory_space<vmem>>, vector<8x128xf32>
    tpu.vector_store %arg10[%c0_74, %c0_75], %169 {strides = array<i32>} : memref<8x128xf32, #tpu.memory_space<vmem>>, vector<8x128xf32>,
    %c0_76 = arith.constant 0 : index
    %c0_77 = arith.constant 0 : index
    %173 = vector.load %arg9[%c0_76, %c0_77] : memref<8x128xf32, #tpu.memory_space<vmem>>, vector<8x128xf32>
    tpu.vector_store %arg9[%c0_76, %c0_77], %171 {strides = array<i32>} : memref<8x128xf32, #tpu.memory_space<vmem>>, vector<8x128xf32>,
    %174 = arith.truncf %171 : vector<8x128xf32> to vector<8x128xbf16>
    %175 = arith.index_cast %c3_i32 : i32 to index
    %c0_78 = arith.constant 0 : index
    %c0_79 = arith.constant 0 : index
    %176 = vector.load %arg6[%175, %c0_78, %c0_79] : memref<4x8x128xbf16, #tpu.memory_space<vmem>>, vector<1x8x128xbf16>
    %177 = vector.shape_cast %176 : vector<1x8x128xbf16> to vector<8x128xbf16>
    %178 = vector.shape_cast %174 : vector<8x128xbf16> to vector<1x8x128xbf16>
    tpu.vector_store %arg6[%175, %c0_78, %c0_79], %178 {strides = array<i32>} : memref<4x8x128xbf16, #tpu.memory_space<vmem>>, vector<1x8x128xbf16>,
    %c4_i32 = arith.constant 4 : i32
    %c1_i32_80 = arith.constant 1 : i32
    %179 = arith.cmpi eq, %arg0, %c1_i32_80 : i32
    %180 = arith.extui %179 : i1 to i32
    %c0_i32_81 = arith.constant 0 : i32
    %181 = arith.cmpi ne, %180, %c0_i32_81 : i32
    scf.if %181 {
      %c0_82 = arith.constant 0 : index
      %c0_83 = arith.constant 0 : index
      %182 = vector.load %arg9[%c0_82, %c0_83] : memref<8x128xf32, #tpu.memory_space<vmem>>, vector<8x128xf32>
      %c0_84 = arith.constant 0 : index
      %c0_85 = arith.constant 0 : index
      %183 = vector.load %arg7[%c0_84, %c0_85] : memref<8x128xf32, #tpu.memory_space<vmem>>, vector<8x128xf32>
      tpu.vector_store %arg7[%c0_84, %c0_85], %182 {strides = array<i32>} : memref<8x128xf32, #tpu.memory_space<vmem>>, vector<8x128xf32>,
      %c0_86 = arith.constant 0 : index
      %c0_87 = arith.constant 0 : index
      %184 = vector.load %arg10[%c0_86, %c0_87] : memref<8x128xf32, #tpu.memory_space<vmem>>, vector<8x128xf32>
      %c0_88 = arith.constant 0 : index
      %c0_89 = arith.constant 0 : index
      %185 = vector.load %arg8[%c0_88, %c0_89] : memref<8x128xf32, #tpu.memory_space<vmem>>, vector<8x128xf32>
      tpu.vector_store %arg8[%c0_88, %c0_89], %184 {strides = array<i32>} : memref<8x128xf32, #tpu.memory_space<vmem>>, vector<8x128xf32>,
    } else {
    }
    return
  }
  func.func @transform_0(%arg0: i32) -> (i32, i32, i32) {
    %c0_i32 = arith.constant 0 : i32
    %c0_i32_0 = arith.constant 0 : i32
    %c0_i32_1 = arith.constant 0 : i32
    return %arg0, %c0_i32, %c0_i32_0 : i32, i32, i32
  }
  func.func @transform_1(%arg0: i32) -> (i32, i32) {
    %c0_i32 = arith.constant 0 : i32
    %c0_i32_0 = arith.constant 0 : i32
    %c0_i32_1 = arith.constant 0 : i32
    return %c0_i32, %c0_i32_0 : i32, i32
  }
  func.func @transform_2(%arg0: i32) -> (i32, i32) {
    %c0_i32 = arith.constant 0 : i32
    %c0_i32_0 = arith.constant 0 : i32
    %c0_i32_1 = arith.constant 0 : i32
    return %c0_i32, %c0_i32_0 : i32, i32
  }
  func.func @transform_3(%arg0: i32) -> (i32, i32) {
    %c0_i32 = arith.constant 0 : i32
    %c0_i32_0 = arith.constant 0 : i32
    %c0_i32_1 = arith.constant 0 : i32
    return %c0_i32, %c0_i32_0 : i32, i32
  }
  func.func @transform_4(%arg0: i32) -> (i32, i32) {
    %c0_i32 = arith.constant 0 : i32
    %c0_i32_0 = arith.constant 0 : i32
    %c0_i32_1 = arith.constant 0 : i32
    return %c0_i32, %c0_i32_0 : i32, i32
  }
  func.func @transform_5(%arg0: i32) -> (i32, i32, i32) {
    %c0_i32 = arith.constant 0 : i32
    %c0_i32_0 = arith.constant 0 : i32
    %c0_i32_1 = arith.constant 0 : i32
    return %arg0, %c0_i32, %c0_i32_0 : i32, i32, i32
  }
  func.func @transform_6(%arg0: i32) -> (i32, i32) {
    %c0_i32 = arith.constant 0 : i32
    %c0_i32_0 = arith.constant 0 : i32
    %c0_i32_1 = arith.constant 0 : i32
    return %c0_i32, %c0_i32_0 : i32, i32
  }
  func.func @transform_7(%arg0: i32) -> (i32, i32) {
    %c0_i32 = arith.constant 0 : i32
    %c0_i32_0 = arith.constant 0 : i32
    %c0_i32_1 = arith.constant 0 : i32
    return %c0_i32, %c0_i32_0 : i32, i32
  }
}

</mosaic_0001>

<llo_original>
// kernel: rnn_model_forward.5
$region0: #{rnn_model_forward.5}
  #allocation0 [shape = 'u32[]', space=smem, size = 0x4, offset = 0x4, fixed_abs, tag = 'smem constant byte address 0x4 - core index']
  #allocation1 [shape = 'u32[72,128]{1,0:T(1,128)}', space=vmem, size = 0x9000, scoped, tag = 'internal scratch']
  %s0 = inlined_call_operand.vmem [shape: bf16[64,128], index: 0, kind: input, shape index: {}]
  %s1 = inlined_call_operand.vmem [shape: bf16[128,128], index: 1, kind: input, shape index: {}]
  %s2 = inlined_call_operand.vmem [shape: f32[1,128], index: 2, kind: input, shape index: {}]
  %s3 = inlined_call_operand.vmem [shape: f32[64,128], index: 3, kind: output, shape index: {}]
  %s4 = sld [smem:[#allocation0]]
  $region22: #{rnn_model_forward.5} parent=0
    _
  %s6 = ssub.s32 1, %s4
  %s7 = scalar_select 0, %s6, %s4
  // Predicated region
  $region2: #{rnn_model_forward.5} parent=0 // pred_check
    _
  $region3: #{rnn_model_forward.5} parent=0 // pred_check_branch
    %9 = sbr.rel (0) target = $region5
  $region4: #{rnn_model_forward.5} parent=0 // pred_region
    _
  $region5: #{rnn_model_forward.5} parent=0 // pred_fallthru
    _
  // Predicated region
  $region6: #{rnn_model_forward.5} parent=0 // pred_check
    _
  $region7: #{rnn_model_forward.5} parent=0 // pred_check_branch
    %11 = sbr.rel (0) target = $region9
  $region8: #{rnn_model_forward.5} parent=0 // pred_region
    _
  $region9: #{rnn_model_forward.5} parent=0 // pred_fallthru
    _
  // Predicated region
  $region10: #{rnn_model_forward.5} parent=0 // pred_check
    _
  $region11: #{rnn_model_forward.5} parent=0 // pred_check_branch
    %13 = sbr.rel (0) target = $region13
  $region12: #{rnn_model_forward.5} parent=0 // pred_region
    _
  $region13: #{rnn_model_forward.5} parent=0 // pred_fallthru
    _
  %v14 = vld [vmem:[%s0] sm:$0xf]
  %v15 = vld [vmem:[%s0 + $0x4] sm:$0xf]
  %v16 = vld [vmem:[%s0 + $0x8] sm:$0xf]
  %v17 = vld [vmem:[%s0 + $0xc] sm:$0xf]
  %v18 = vld [vmem:[%s0 + $0x10] sm:$0xf]
  %v19 = vld [vmem:[%s0 + $0x14] sm:$0xf]
  %v20 = vld [vmem:[%s0 + $0x18] sm:$0xf]
  %v21 = vld [vmem:[%s0 + $0x1c] sm:$0xf]
  %v22 = vld [vmem:[%s1] sm:$0xf]
  %v23 = vld [vmem:[%s1 + $0x4] sm:$0xf]
  %v24 = vld [vmem:[%s1 + $0x8] sm:$0xf]
  %v25 = vld [vmem:[%s1 + $0xc] sm:$0xf]
  %v26 = vld [vmem:[%s1 + $0x10] sm:$0xf]
  %v27 = vld [vmem:[%s1 + $0x14] sm:$0xf]
  %v28 = vld [vmem:[%s1 + $0x18] sm:$0xf]
  %v29 = vld [vmem:[%s1 + $0x1c] sm:$0xf]
  %v30 = vld [vmem:[%s1 + $0x20] sm:$0xf]
  %v31 = vld [vmem:[%s1 + $0x24] sm:$0xf]
  %v32 = vld [vmem:[%s1 + $0x28] sm:$0xf]
  %v33 = vld [vmem:[%s1 + $0x2c] sm:$0xf]
  %v34 = vld [vmem:[%s1 + $0x30] sm:$0xf]
  %v35 = vld [vmem:[%s1 + $0x34] sm:$0xf]
  %v36 = vld [vmem:[%s1 + $0x38] sm:$0xf]
  %v37 = vld [vmem:[%s1 + $0x3c] sm:$0xf]
  %v38 = vld [vmem:[%s2] sm:$0x1]
  %v40 = vperm.slane %v38, 0
  %v50 = vunpack.c.l.b16 %v14
  %v51 = vunpack.c.l.b16 %v15
  %v52 = vunpack.c.l.b16 %v16
  %v53 = vunpack.c.l.b16 %v17
  %v54 = vunpack.c.l.b16 %v18
  %v55 = vunpack.c.l.b16 %v19
  %v56 = vunpack.c.l.b16 %v20
  %v57 = vunpack.c.l.b16 %v21
  %v58 = vpack.c.b16 %v51, %v50
  %v59 = vpack.c.b16 %v53, %v52
  %v60 = vpack.c.b16 %v55, %v54
  %v61 = vpack.c.b16 %v57, %v56
  %v82 = vunpack.c.l.b16 %v22
  %v83 = vunpack.c.l.b16 %v23
  %v84 = vunpack.c.l.b16 %v24
  %v85 = vunpack.c.l.b16 %v25
  %v86 = vunpack.c.l.b16 %v26
  %v87 = vunpack.c.l.b16 %v27
  %v88 = vunpack.c.l.b16 %v28
  %v89 = vunpack.c.l.b16 %v29
  %v90 = vunpack.c.l.b16 %v30
  %v91 = vunpack.c.l.b16 %v31
  %v92 = vunpack.c.l.b16 %v32
  %v93 = vunpack.c.l.b16 %v33
  %v94 = vunpack.c.l.b16 %v34
  %v95 = vunpack.c.l.b16 %v35
  %v96 = vunpack.c.l.b16 %v36
  %v97 = vunpack.c.l.b16 %v37
  %v98 = vpack.c.b16 %v83, %v82
  %v99 = vpack.c.b16 %v85, %v84
  %v100 = vpack.c.b16 %v87, %v86
  %v101 = vpack.c.b16 %v89, %v88
  %v102 = vpack.c.b16 %v91, %v90
  %v103 = vpack.c.b16 %v93, %v92
  %v104 = vpack.c.b16 %v95, %v94
  %v105 = vpack.c.b16 %v97, %v96
  %114 = vmatpush.bf16.msra.mxu0 %v105
  %115 = vmatpush.bf16.msra.mxu0 %v104
  %116 = vmatpush.bf16.msra.mxu0 %v103
  %117 = vmatpush.bf16.msra.mxu0 %v102
  %118 = vmatpush.bf16.msra.mxu0 %v101
  %119 = vmatpush.bf16.msra.mxu0 %v100
  %120 = vmatpush.bf16.msra.mxu0 %v99
  %121 = vmatpush.bf16.msra.mxu0 %v98
  %122 = vmatmul.bf16.gmra.mxu0 %v58
  %v123 = vpop.f32.mrf.mxu0
  %v124 = vadd.f32 %v40, %v123
  %v125 = vpop.f32.mrf.mxu0
  %v126 = vadd.f32 %v40, %v125
  %127 = vmatmul.bf16.gmra.mxu0 %v59
  %v128 = vpop.f32.mrf.mxu0
  %v129 = vadd.f32 %v40, %v128
  %v130 = vpop.f32.mrf.mxu0
  %v131 = vadd.f32 %v40, %v130
  %132 = vmatmul.bf16.gmra.mxu0 %v60
  %v133 = vpop.f32.mrf.mxu0
  %v134 = vadd.f32 %v40, %v133
  %v135 = vpop.f32.mrf.mxu0
  %v136 = vadd.f32 %v40, %v135
  %137 = vmatmul.bf16.gmra.mxu0 %v61
  %v138 = vpop.f32.mrf.mxu0
  %v139 = vadd.f32 %v40, %v138
  %v140 = vpop.f32.mrf.mxu0
  %v141 = vadd.f32 %v40, %v140
  %142 = vdwg.mxu0
  %143 = vst [vmem:[%s3] sm:$0xff] %v124
  %144 = vst [vmem:[%s3 + $0x8] sm:$0xff] %v126
  %145 = vst [vmem:[%s3 + $0x10] sm:$0xff] %v129
  %146 = vst [vmem:[%s3 + $0x18] sm:$0xff] %v131
  %147 = vst [vmem:[%s3 + $0x20] sm:$0xff] %v134
  %148 = vst [vmem:[%s3 + $0x28] sm:$0xff] %v136
  %149 = vst [vmem:[%s3 + $0x30] sm:$0xff] %v139
  %150 = vst [vmem:[%s3 + $0x38] sm:$0xff] %v141
  // Predicated region
  $region14: #{rnn_model_forward.5} parent=0 // pred_check
    _
  $region15: #{rnn_model_forward.5} parent=0 // pred_check_branch
    %152 = sbr.rel (0) target = $region17
  $region16: #{rnn_model_forward.5} parent=0 // pred_region
    _
  $region17: #{rnn_model_forward.5} parent=0 // pred_fallthru
    _
  // Predicated region
  $region18: #{rnn_model_forward.5} parent=0 // pred_check
    _
  $region19: #{rnn_model_forward.5} parent=0 // pred_check_branch
    %154 = sbr.rel (0) target = $region21
  $region20: #{rnn_model_forward.5} parent=0 // pred_region
    _
  $region21: #{rnn_model_forward.5} parent=0 // pred_fallthru
    _

// kernel: rnn_model_forward.3
$region0: #{rnn_model_forward.3}
  #allocation0 [shape = 'u32[]', space=smem, size = 0x4, offset = 0x4, fixed_abs, tag = 'smem constant byte address 0x4 - core index']
  #allocation1 [shape = 'u32[72,128]{1,0:T(1,128)}', space=vmem, size = 0x9000, scoped, tag = 'internal scratch']
  #allocation2 [shape = 'f32[8,128]{1,0:T(8,128)}', space=vmem, size = 0x1000, scoped, tag = 'scratch operand']
  #allocation3 [shape = 'f32[8,128]{1,0:T(8,128)}', space=vmem, size = 0x1000, scoped, tag = 'scratch operand']
  %s0 = inlined_call_operand.vmem [shape: bf16[8,8,128], index: 0, kind: input, shape index: {}]
  %s1 = inlined_call_operand.hbm [shape: bf16[256,512], index: 1, kind: input, shape index: {}]
  %s2 = inlined_call_operand.vmem [shape: f32[1,512], index: 2, kind: input, shape index: {}]
  %s3 = inlined_call_operand.vmem [shape: f32[8,128], index: 3, kind: input, shape index: {}]
  %s4 = inlined_call_operand.vmem [shape: f32[8,128], index: 4, kind: input, shape index: {}]
  %s5 = inlined_call_operand.vmem [shape: bf16[8,8,128], index: 5, kind: output, shape index: {0}]
  %s6 = inlined_call_operand.vmem [shape: f32[8,128], index: 6, kind: output, shape index: {1}]
  %s7 = inlined_call_operand.vmem [shape: f32[8,128], index: 7, kind: output, shape index: {2}]
  %8 = xla_tuple %s5, %s6, %s7
  %s9 = sld [smem:[#allocation0]]
  $region81: #{rnn_model_forward.3} parent=0
    _
  %s11 = ssub.s32 1, %s9
  %s12 = scalar_select 0, %s11, %s9
  $region1: #{rnn_model_forward.3} parent=0
    #allocation4 [shape = 'u8[262144]{0}', space=vmem, size = 0x40000, scoped, tag = 'input window, operand 1, single buffered']
    #allocation5 [shape = 's32[2]{0}', space=sflag, size = 0x8, scoped, tag = 'scoped memory for rnn_model_forward.3']
    %13 = vsyncpa [#allocation5], 0
    loop: start=0, step=1, limit=4
    $region2: #{rnn_model_forward.3} parent=1 // loop_pre_header
      _
    $region3: #{rnn_model_forward.3} parent=1 // loop_header
      %s15 = sphi 0, %s19
      %p16 = scmp.ge.s32.totalorder %s15, 4
      %s25 = sphi 0, %s27
      %s28 = sphi 0, %s25
      %s29 = sphi 0, %s28
      %s45 = sphi 0, %s29
      %s49 = sphi 0, %s49
      %s51 = sphi 0, %s49
      %s52 = sphi 0, %s51
      %s66 = sphi 0, %s52
      %s70 = sphi 0, %s70
      %s72 = sphi 0, %s70
      %s73 = sphi 0, %s72
      %s87 = sphi 0, %s73
      %s91 = sphi 0, %s91
      %s93 = sphi 0, %s91
      %s94 = sphi 0, %s93
      %s108 = sphi 0, %s94
      %s112 = sphi 0, %s112
      %s114 = sphi 0, %s112
      %s115 = sphi 0, %s114
      %s129 = sphi 0, %s115
      %s135 = sphi 0, %s137
      %s138 = sphi 0, %s135
      %s139 = sphi 0, %s138
      %s155 = sphi 0, %s139
      %s159 = sphi 0, %s159
      %s161 = sphi 0, %s159
      %s162 = sphi 0, %s161
      %s176 = sphi 0, %s162
      %s180 = sphi 0, %s180
      %s182 = sphi 0, %s180
      %s183 = sphi 0, %s182
      %s197 = sphi 0, %s183
    $region4: #{rnn_model_forward.3} parent=1 // loop_header_branch
      %18 = sbr.rel (%p16) target = $region8
    $region5: #{rnn_model_forward.3} parent=1 // loop_body
      %s20 = ssub.s32 %s15, 1
      %s21 = ssub.s32 %s15, 2
      %s22 = sadd.s32 %s15, 1
      %s23 = ssub.s32 %s15, %s22
      %p24 = scmp.eq.s32.totalorder %s23, 0
      %s26 = sadd.s32 %s25, 1
      %s27 = scalar_select %p24, %s25, %s26
      %p30 = pneg %p24
      %p31 = scmp.eq.s32.totalorder %s15, 1
      %p32 = por %p30, %p31
      %p33 = scmp.ne.s32.totalorder %s25, %s28
      %p34 = scmp.eq.s32.totalorder %s15, 0
      %p35 = por %p33, %p34
      %p36 = scmp.ne.s32.totalorder %s25, %s28
      %p37 = scmp.eq.s32.totalorder %s20, 1
      %p38 = por %p36, %p37
      %p39 = scmp.ne.s32.totalorder %s28, %s29
      %p40 = scmp.eq.s32.totalorder %s20, 0
      %p41 = por %p39, %p40
      %p42 = scmp.ne.s32.totalorder %s28, %s29
      %p43 = scmp.eq.s32.totalorder %s21, 1
      %p44 = por %p42, %p43
      %p46 = scmp.ne.s32.totalorder %s29, %s45
      %p47 = scmp.eq.s32.totalorder %s21, 0
      %p48 = por %p46, %p47
      %s50 = sadd.s32 %s49, 1
      %p53 = scmp.eq.s32.totalorder %s15, 1
      %p54 = scmp.ne.s32.totalorder %s49, %s51
      %p55 = scmp.eq.s32.totalorder %s15, 0
      %p56 = por %p54, %p55
      %p57 = scmp.ne.s32.totalorder %s49, %s51
      %p58 = scmp.eq.s32.totalorder %s20, 1
      %p59 = por %p57, %p58
      %p60 = scmp.ne.s32.totalorder %s51, %s52
      %p61 = scmp.eq.s32.totalorder %s20, 0
      %p62 = por %p60, %p61
      %p63 = scmp.ne.s32.totalorder %s51, %s52
      %p64 = scmp.eq.s32.totalorder %s21, 1
      %p65 = por %p63, %p64
      %p67 = scmp.ne.s32.totalorder %s52, %s66
      %p68 = scmp.eq.s32.totalorder %s21, 0
      %p69 = por %p67, %p68
      %s71 = sadd.s32 %s70, 1
      %p74 = scmp.eq.s32.totalorder %s15, 1
      %p75 = scmp.ne.s32.totalorder %s70, %s72
      %p76 = scmp.eq.s32.totalorder %s15, 0
      %p77 = por %p75, %p76
      %p78 = scmp.ne.s32.totalorder %s70, %s72
      %p79 = scmp.eq.s32.totalorder %s20, 1
      %p80 = por %p78, %p79
      %p81 = scmp.ne.s32.totalorder %s72, %s73
      %p82 = scmp.eq.s32.totalorder %s20, 0
      %p83 = por %p81, %p82
      %p84 = scmp.ne.s32.totalorder %s72, %s73
      %p85 = scmp.eq.s32.totalorder %s21, 1
      %p86 = por %p84, %p85
      %p88 = scmp.ne.s32.totalorder %s73, %s87
      %p89 = scmp.eq.s32.totalorder %s21, 0
      %p90 = por %p88, %p89
      %s92 = sadd.s32 %s91, 1
      %p95 = scmp.eq.s32.totalorder %s15, 1
      %p96 = scmp.ne.s32.totalorder %s91, %s93
      %p97 = scmp.eq.s32.totalorder %s15, 0
      %p98 = por %p96, %p97
      %p99 = scmp.ne.s32.totalorder %s91, %s93
      %p100 = scmp.eq.s32.totalorder %s20, 1
      %p101 = por %p99, %p100
      %p102 = scmp.ne.s32.totalorder %s93, %s94
      %p103 = scmp.eq.s32.totalorder %s20, 0
      %p104 = por %p102, %p103
      %p105 = scmp.ne.s32.totalorder %s93, %s94
      %p106 = scmp.eq.s32.totalorder %s21, 1
      %p107 = por %p105, %p106
      %p109 = scmp.ne.s32.totalorder %s94, %s108
      %p110 = scmp.eq.s32.totalorder %s21, 0
      %p111 = por %p109, %p110
      %s113 = sadd.s32 %s112, 1
      %p116 = scmp.eq.s32.totalorder %s15, 1
      %p117 = scmp.ne.s32.totalorder %s112, %s114
      %p118 = scmp.eq.s32.totalorder %s15, 0
      %p119 = por %p117, %p118
      %p120 = scmp.ne.s32.totalorder %s112, %s114
      %p121 = scmp.eq.s32.totalorder %s20, 1
      %p122 = por %p120, %p121
      %p123 = scmp.ne.s32.totalorder %s114, %s115
      %p124 = scmp.eq.s32.totalorder %s20, 0
      %p125 = por %p123, %p124
      %p126 = scmp.ne.s32.totalorder %s114, %s115
      %p127 = scmp.eq.s32.totalorder %s21, 1
      %p128 = por %p126, %p127
      %p130 = scmp.ne.s32.totalorder %s115, %s129
      %p131 = scmp.eq.s32.totalorder %s21, 0
      %p132 = por %p130, %p131
      %s133 = ssub.s32 %s15, %s22
      %p134 = scmp.eq.s32.totalorder %s133, 0
      %s136 = sadd.s32 %s135, 1
      %s137 = scalar_select %p134, %s135, %s136
      %p140 = pneg %p134
      %p141 = scmp.eq.s32.totalorder %s15, 1
      %p142 = por %p140, %p141
      %p143 = scmp.ne.s32.totalorder %s135, %s138
      %p144 = scmp.eq.s32.totalorder %s15, 0
      %p145 = por %p143, %p144
      %p146 = scmp.ne.s32.totalorder %s135, %s138
      %p147 = scmp.eq.s32.totalorder %s20, 1
      %p148 = por %p146, %p147
      %p149 = scmp.ne.s32.totalorder %s138, %s139
      %p150 = scmp.eq.s32.totalorder %s20, 0
      %p151 = por %p149, %p150
      %p152 = scmp.ne.s32.totalorder %s138, %s139
      %p153 = scmp.eq.s32.totalorder %s21, 1
      %p154 = por %p152, %p153
      %p156 = scmp.ne.s32.totalorder %s139, %s155
      %p157 = scmp.eq.s32.totalorder %s21, 0
      %p158 = por %p156, %p157
      %s160 = sadd.s32 %s159, 1
      %p163 = scmp.eq.s32.totalorder %s15, 1
      %p164 = scmp.ne.s32.totalorder %s159, %s161
      %p165 = scmp.eq.s32.totalorder %s15, 0
      %p166 = por %p164, %p165
      %p167 = scmp.ne.s32.totalorder %s159, %s161
      %p168 = scmp.eq.s32.totalorder %s20, 1
      %p169 = por %p167, %p168
      %p170 = scmp.ne.s32.totalorder %s161, %s162
      %p171 = scmp.eq.s32.totalorder %s20, 0
      %p172 = por %p170, %p171
      %p173 = scmp.ne.s32.totalorder %s161, %s162
      %p174 = scmp.eq.s32.totalorder %s21, 1
      %p175 = por %p173, %p174
      %p177 = scmp.ne.s32.totalorder %s162, %s176
      %p178 = scmp.eq.s32.totalorder %s21, 0
      %p179 = por %p177, %p178
      %s181 = sadd.s32 %s180, 1
      %p184 = scmp.eq.s32.totalorder %s15, 1
      %p185 = scmp.ne.s32.totalorder %s180, %s182
      %p186 = scmp.eq.s32.totalorder %s15, 0
      %p187 = por %p185, %p186
      %p188 = scmp.ne.s32.totalorder %s180, %s182
      %p189 = scmp.eq.s32.totalorder %s20, 1
      %p190 = por %p188, %p189
      %p191 = scmp.ne.s32.totalorder %s182, %s183
      %p192 = scmp.eq.s32.totalorder %s20, 0
      %p193 = por %p191, %p192
      %p194 = scmp.ne.s32.totalorder %s182, %s183
      %p195 = scmp.eq.s32.totalorder %s21, 1
      %p196 = por %p194, %p195
      %p198 = scmp.ne.s32.totalorder %s183, %s197
      %p199 = scmp.eq.s32.totalorder %s21, 0
      %p200 = por %p198, %p199
      %p201 = scmp.le.s32.totalorder 1, %s15
      %p202 = scmp.lt.s32.totalorder %s15, 3
      %p203 = pnand %p201, %p202
      %p204 = pneg %p203
      // Predicated region
      $region9: #{rnn_model_forward.3} parent=5 // pred_check
        _
      $region10: #{rnn_model_forward.3} parent=5 // pred_check_branch
        %206 = sbr.rel (%p203) target = $region12
      $region11: #{rnn_model_forward.3} parent=5 // pred_region
        %s207 = ssub.s32 %s15, 1
        // Predicated region
        $region13: #{rnn_model_forward.3} parent=11 // pred_check
          %p208 = pneg %p62
        $region14: #{rnn_model_forward.3} parent=11 // pred_check_branch
          %210 = sbr.rel (%p208) target = $region16
        $region15: #{rnn_model_forward.3} parent=11 // pred_region
          %212 = vsyncadd [#allocation5], 0
          %s213 = sshll.u32 %s1, 4
          %s214 = int_to_ptr.hbm [resolvable:$true] %s213
          %s215 = sshll.u32 [#allocation4], 4
          %s216 = int_to_ptr.vmem [resolvable:$true] %s215
          %221 = dma.hbm_to_vmem [thread:$0]  %s214, 8192, %s216, [#allocation5], 256, 256, 16
        $region16: #{rnn_model_forward.3} parent=11 // pred_fallthru
          _
        // Predicated region
        $region17: #{rnn_model_forward.3} parent=11 // pred_check
          %p222 = pneg %p83
        $region18: #{rnn_model_forward.3} parent=11 // pred_check_branch
          %224 = sbr.rel (%p222) target = $region20
        $region19: #{rnn_model_forward.3} parent=11 // pred_region
          _
        $region20: #{rnn_model_forward.3} parent=11 // pred_fallthru
          _
        // Predicated region
        $region21: #{rnn_model_forward.3} parent=11 // pred_check
          %p225 = pneg %p104
        $region22: #{rnn_model_forward.3} parent=11 // pred_check_branch
          %227 = sbr.rel (%p225) target = $region24
        $region23: #{rnn_model_forward.3} parent=11 // pred_region
          _
        $region24: #{rnn_model_forward.3} parent=11 // pred_fallthru
          _
        // Predicated region
        $region25: #{rnn_model_forward.3} parent=11 // pred_check
          %p228 = pneg %p125
        $region26: #{rnn_model_forward.3} parent=11 // pred_check_branch
          %230 = sbr.rel (%p228) target = $region28
        $region27: #{rnn_model_forward.3} parent=11 // pred_region
          _
        $region28: #{rnn_model_forward.3} parent=11 // pred_fallthru
          _
      $region12: #{rnn_model_forward.3} parent=5 // pred_fallthru
        _
      %p231 = scmp.lt.s32.totalorder %s15, 2
      // Predicated region
      $region29: #{rnn_model_forward.3} parent=5 // pred_check
        %p232 = pneg %p231
      $region30: #{rnn_model_forward.3} parent=5 // pred_check_branch
        %234 = sbr.rel (%p232) target = $region32
      $region31: #{rnn_model_forward.3} parent=5 // pred_region
        // Predicated region
        $region33: #{rnn_model_forward.3} parent=31 // pred_check
          %p235 = pneg %p35
        $region34: #{rnn_model_forward.3} parent=31 // pred_check_branch
          %237 = sbr.rel (%p235) target = $region36
        $region35: #{rnn_model_forward.3} parent=31 // pred_region
          %s238 = smul.u32 4, %s15
          %p239 = scmp.lt.s32.totalorder %s238, 7
          %s240 = scalar_select %p239, %s238, 7
          %s241 = smul.addr %s240, 4
          %s242 = scalar_lea.vmem %s0, %s241
          %s243 = smul.u32 4, %s15
        $region36: #{rnn_model_forward.3} parent=31 // pred_fallthru
          _
      $region32: #{rnn_model_forward.3} parent=5 // pred_fallthru
        _
      %p244 = scmp.le.s32.totalorder 1, %s15
      %p245 = scmp.lt.s32.totalorder %s15, 3
      %p246 = pnand %p244, %p245
      %p247 = pneg %p246
      // Predicated region
      $region37: #{rnn_model_forward.3} parent=5 // pred_check
        _
      $region38: #{rnn_model_forward.3} parent=5 // pred_check_branch
        %249 = sbr.rel (%p246) target = $region40
      $region39: #{rnn_model_forward.3} parent=5 // pred_region
        %s250 = ssub.s32 %s15, 1
        // Predicated region
        $region41: #{rnn_model_forward.3} parent=39 // pred_check
          %p251 = pneg %p62
        $region42: #{rnn_model_forward.3} parent=39 // pred_check_branch
          %253 = sbr.rel (%p251) target = $region44
        $region43: #{rnn_model_forward.3} parent=39 // pred_region
          %255 = dma.done [#allocation5], 8192
        $region44: #{rnn_model_forward.3} parent=39 // pred_fallthru
          _
        %s256 = smul.u32 4, %s20
        %p257 = scmp.lt.s32.totalorder %s256, 7
        %s258 = scalar_select %p257, %s256, 7
        %s259 = smul.addr %s258, 4
        %s260 = scalar_lea.vmem %s0, %s259
        %p261 = pneg %p41
        %p262 = pneg %p38
        %p263 = pneg %p62
        %p264 = pneg %p59
        %p265 = pneg %p83
        %p266 = pneg %p80
        %p267 = pneg %p104
        %p268 = pneg %p101
        %p269 = pneg %p125
        %p270 = pneg %p122
        %p271 = pneg %p151
        %p272 = pneg %p148
        %s273 = smul.u32 4, %s20
        %p274 = scmp.lt.s32.totalorder %s273, 7
        %s275 = scalar_select %p274, %s273, 7
        %s276 = smul.addr %s275, 4
        %s277 = scalar_lea.vmem %s5, %s276
        %p278 = pneg %p172
        %p279 = pneg %p169
        %p280 = pneg %p193
        %p281 = pneg %p190
        %s282 = smul.u32 4, %s20
        %p283 = scmp.lt.s32.totalorder %s282, 7
        %s284 = scalar_select %p283, %s282, 7
        %s285 = smul.addr %s284, 4
        %s286 = scalar_lea.vmem %s0, %s285
        %s287 = smul.u32 4, %s20
        %s288 = smul.u32 4, %s20
        %p289 = scmp.lt.s32.totalorder %s288, 7
        %s290 = scalar_select %p289, %s288, 7
        %s291 = smul.addr %s290, 4
        %s292 = scalar_lea.vmem %s5, %s291
        %s293 = smul.u32 4, %s20
        %p294 = scmp.eq.s32.totalorder %s20, 0
        // Predicated region
        $region45: #{rnn_model_forward.3} parent=39 // pred_check
          %p295 = pneg %p294
        $region46: #{rnn_model_forward.3} parent=39 // pred_check_branch
          %297 = sbr.rel (%p295) target = $region48
        $region47: #{rnn_model_forward.3} parent=39 // pred_region
          %v298 = vld [vmem:[%s3] sm:$0xff]
          %299 = vst [vmem:[#allocation2] sm:$0xff] %v298
          %v300 = vld [vmem:[%s4] sm:$0xff]
          %301 = vst [vmem:[#allocation3] sm:$0xff] %v300
        $region48: #{rnn_model_forward.3} parent=39 // pred_fallthru
          _
        %v302 = vld [vmem:[%s286] sm:$0xf]
        %v303 = vld [vmem:[#allocation2] sm:$0xff]
        %v304 = vpack.c.bf16 %v303, %v303
        %v305 = vld [vmem:[#allocation4] sm:$0xff]
        %v306 = vld [vmem:[#allocation4 + $0x8] sm:$0xff]
        %v307 = vld [vmem:[#allocation4 + $0x10] sm:$0xff]
        %v308 = vld [vmem:[#allocation4 + $0x18] sm:$0xff]
        %v309 = vld [vmem:[#allocation4 + $0x20] sm:$0xff]
        %v310 = vld [vmem:[#allocation4 + $0x28] sm:$0xff]
        %v311 = vld [vmem:[#allocation4 + $0x30] sm:$0xff]
        %v312 = vld [vmem:[#allocation4 + $0x38] sm:$0xff]
        %v313 = vld [vmem:[#allocation4 + $0x40] sm:$0xff]
        %v314 = vld [vmem:[#allocation4 + $0x48] sm:$0xff]
        %v315 = vld [vmem:[#allocation4 + $0x50] sm:$0xff]
        %v316 = vld [vmem:[#allocation4 + $0x58] sm:$0xff]
        %v317 = vld [vmem:[#allocation4 + $0x60] sm:$0xff]
        %v318 = vld [vmem:[#allocation4 + $0x68] sm:$0xff]
        %v319 = vld [vmem:[#allocation4 + $0x70] sm:$0xff]
        %v320 = vld [vmem:[#allocation4 + $0x78] sm:$0xff]
        %v321 = vld [vmem:[#allocation4 + $0x80] sm:$0xff]
        %v322 = vld [vmem:[#allocation4 + $0x88] sm:$0xff]
        %v323 = vld [vmem:[#allocation4 + $0x90] sm:$0xff]
        %v324 = vld [vmem:[#allocation4 + $0x98] sm:$0xff]
        %v325 = vld [vmem:[#allocation4 + $0xa0] sm:$0xff]
        %v326 = vld [vmem:[#allocation4 + $0xa8] sm:$0xff]
        %v327 = vld [vmem:[#allocation4 + $0xb0] sm:$0xff]
        %v328 = vld [vmem:[#allocation4 + $0xb8] sm:$0xff]
        %v329 = vld [vmem:[#allocation4 + $0xc0] sm:$0xff]
        %v330 = vld [vmem:[#allocation4 + $0xc8] sm:$0xff]
        %v331 = vld [vmem:[#allocation4 + $0xd0] sm:$0xff]
        %v332 = vld [vmem:[#allocation4 + $0xd8] sm:$0xff]
        %v333 = vld [vmem:[#allocation4 + $0xe0] sm:$0xff]
        %v334 = vld [vmem:[#allocation4 + $0xe8] sm:$0xff]
        %v335 = vld [vmem:[#allocation4 + $0xf0] sm:$0xff]
        %v336 = vld [vmem:[#allocation4 + $0xf8] sm:$0xff]
        %v337 = vld [vmem:[#allocation4 + $0x100] sm:$0xff]
        %v338 = vld [vmem:[#allocation4 + $0x108] sm:$0xff]
        %v339 = vld [vmem:[#allocation4 + $0x110] sm:$0xff]
        %v340 = vld [vmem:[#allocation4 + $0x118] sm:$0xff]
        %v341 = vld [vmem:[#allocation4 + $0x120] sm:$0xff]
        %v342 = vld [vmem:[#allocation4 + $0x128] sm:$0xff]
        %v343 = vld [vmem:[#allocation4 + $0x130] sm:$0xff]
        %v344 = vld [vmem:[#allocation4 + $0x138] sm:$0xff]
        %v345 = vld [vmem:[#allocation4 + $0x140] sm:$0xff]
        %v346 = vld [vmem:[#allocation4 + $0x148] sm:$0xff]
        %v347 = vld [vmem:[#allocation4 + $0x150] sm:$0xff]
        %v348 = vld [vmem:[#allocation4 + $0x158] sm:$0xff]
        %v349 = vld [vmem:[#allocation4 + $0x160] sm:$0xff]
        %v350 = vld [vmem:[#allocation4 + $0x168] sm:$0xff]
        %v351 = vld [vmem:[#allocation4 + $0x170] sm:$0xff]
        %v352 = vld [vmem:[#allocation4 + $0x178] sm:$0xff]
        %v353 = vld [vmem:[#allocation4 + $0x180] sm:$0xff]
        %v354 = vld [vmem:[#allocation4 + $0x188] sm:$0xff]
        %v355 = vld [vmem:[#allocation4 + $0x190] sm:$0xff]
        %v356 = vld [vmem:[#allocation4 + $0x198] sm:$0xff]
        %v357 = vld [vmem:[#allocation4 + $0x1a0] sm:$0xff]
        %v358 = vld [vmem:[#allocation4 + $0x1a8] sm:$0xff]
        %v359 = vld [vmem:[#allocation4 + $0x1b0] sm:$0xff]
        %v360 = vld [vmem:[#allocation4 + $0x1b8] sm:$0xff]
        %v361 = vld [vmem:[#allocation4 + $0x1c0] sm:$0xff]
        %v362 = vld [vmem:[#allocation4 + $0x1c8] sm:$0xff]
        %v363 = vld [vmem:[#allocation4 + $0x1d0] sm:$0xff]
        %v364 = vld [vmem:[#allocation4 + $0x1d8] sm:$0xff]
        %v365 = vld [vmem:[#allocation4 + $0x1e0] sm:$0xff]
        %v366 = vld [vmem:[#allocation4 + $0x1e8] sm:$0xff]
        %v367 = vld [vmem:[#allocation4 + $0x1f0] sm:$0xff]
        %v368 = vld [vmem:[#allocation4 + $0x1f8] sm:$0xff]
        %v369 = vld [vmem:[%s2] sm:$0xf]
        %v371 = vperm.slane %v369, 0
        %v372 = vperm.slane %v369, 1
        %v373 = vperm.slane %v369, 2
        %v374 = vperm.slane %v369, 3
        %v443 = vunpack.c.l.b16 %v305
        %v444 = vunpack.c.h.b16 %v305
        %v445 = vunpack.c.l.b16 %v306
        %v446 = vunpack.c.h.b16 %v306
        %v447 = vunpack.c.l.b16 %v307
        %v448 = vunpack.c.h.b16 %v307
        %v449 = vunpack.c.l.b16 %v308
        %v450 = vunpack.c.h.b16 %v308
        %v451 = vunpack.c.l.b16 %v309
        %v452 = vunpack.c.h.b16 %v309
        %v453 = vunpack.c.l.b16 %v310
        %v454 = vunpack.c.h.b16 %v310
        %v455 = vunpack.c.l.b16 %v311
        %v456 = vunpack.c.h.b16 %v311
        %v457 = vunpack.c.l.b16 %v312
        %v458 = vunpack.c.h.b16 %v312
        %v459 = vunpack.c.l.b16 %v313
        %v460 = vunpack.c.h.b16 %v313
        %v461 = vunpack.c.l.b16 %v314
        %v462 = vunpack.c.h.b16 %v314
        %v463 = vunpack.c.l.b16 %v315
        %v464 = vunpack.c.h.b16 %v315
        %v465 = vunpack.c.l.b16 %v316
        %v466 = vunpack.c.h.b16 %v316
        %v467 = vunpack.c.l.b16 %v317
        %v468 = vunpack.c.h.b16 %v317
        %v469 = vunpack.c.l.b16 %v318
        %v470 = vunpack.c.h.b16 %v318
        %v471 = vunpack.c.l.b16 %v319
        %v472 = vunpack.c.h.b16 %v319
        %v473 = vunpack.c.l.b16 %v320
        %v474 = vunpack.c.h.b16 %v320
        %v475 = vunpack.c.l.b16 %v321
        %v476 = vunpack.c.h.b16 %v321
        %v477 = vunpack.c.l.b16 %v322
        %v478 = vunpack.c.h.b16 %v322
        %v479 = vunpack.c.l.b16 %v323
        %v480 = vunpack.c.h.b16 %v323
        %v481 = vunpack.c.l.b16 %v324
        %v482 = vunpack.c.h.b16 %v324
        %v483 = vunpack.c.l.b16 %v325
        %v484 = vunpack.c.h.b16 %v325
        %v485 = vunpack.c.l.b16 %v326
        %v486 = vunpack.c.h.b16 %v326
        %v487 = vunpack.c.l.b16 %v327
        %v488 = vunpack.c.h.b16 %v327
        %v489 = vunpack.c.l.b16 %v328
        %v490 = vunpack.c.h.b16 %v328
        %v491 = vunpack.c.l.b16 %v329
        %v492 = vunpack.c.h.b16 %v329
        %v493 = vunpack.c.l.b16 %v330
        %v494 = vunpack.c.h.b16 %v330
        %v495 = vunpack.c.l.b16 %v331
        %v496 = vunpack.c.h.b16 %v331
        %v497 = vunpack.c.l.b16 %v332
        %v498 = vunpack.c.h.b16 %v332
        %v499 = vunpack.c.l.b16 %v333
        %v500 = vunpack.c.h.b16 %v333
        %v501 = vunpack.c.l.b16 %v334
        %v502 = vunpack.c.h.b16 %v334
        %v503 = vunpack.c.l.b16 %v335
        %v504 = vunpack.c.h.b16 %v335
        %v505 = vunpack.c.l.b16 %v336
        %v506 = vunpack.c.h.b16 %v336
        %v507 = vunpack.c.l.b16 %v337
        %v508 = vunpack.c.h.b16 %v337
        %v509 = vunpack.c.l.b16 %v338
        %v510 = vunpack.c.h.b16 %v338
        %v511 = vunpack.c.l.b16 %v339
        %v512 = vunpack.c.h.b16 %v339
        %v513 = vunpack.c.l.b16 %v340
        %v514 = vunpack.c.h.b16 %v340
        %v515 = vunpack.c.l.b16 %v341
        %v516 = vunpack.c.h.b16 %v341
        %v517 = vunpack.c.l.b16 %v342
        %v518 = vunpack.c.h.b16 %v342
        %v519 = vunpack.c.l.b16 %v343
        %v520 = vunpack.c.h.b16 %v343
        %v521 = vunpack.c.l.b16 %v344
        %v522 = vunpack.c.h.b16 %v344
        %v523 = vunpack.c.l.b16 %v345
        %v524 = vunpack.c.h.b16 %v345
        %v525 = vunpack.c.l.b16 %v346
        %v526 = vunpack.c.h.b16 %v346
        %v527 = vunpack.c.l.b16 %v347
        %v528 = vunpack.c.h.b16 %v347
        %v529 = vunpack.c.l.b16 %v348
        %v530 = vunpack.c.h.b16 %v348
        %v531 = vunpack.c.l.b16 %v349
        %v532 = vunpack.c.h.b16 %v349
        %v533 = vunpack.c.l.b16 %v350
        %v534 = vunpack.c.h.b16 %v350
        %v535 = vunpack.c.l.b16 %v351
        %v536 = vunpack.c.h.b16 %v351
        %v537 = vunpack.c.l.b16 %v352
        %v538 = vunpack.c.h.b16 %v352
        %v539 = vunpack.c.l.b16 %v353
        %v540 = vunpack.c.h.b16 %v353
        %v541 = vunpack.c.l.b16 %v354
        %v542 = vunpack.c.h.b16 %v354
        %v543 = vunpack.c.l.b16 %v355
        %v544 = vunpack.c.h.b16 %v355
        %v545 = vunpack.c.l.b16 %v356
        %v546 = vunpack.c.h.b16 %v356
        %v547 = vunpack.c.l.b16 %v357
        %v548 = vunpack.c.h.b16 %v357
        %v549 = vunpack.c.l.b16 %v358
        %v550 = vunpack.c.h.b16 %v358
        %v551 = vunpack.c.l.b16 %v359
        %v552 = vunpack.c.h.b16 %v359
        %v553 = vunpack.c.l.b16 %v360
        %v554 = vunpack.c.h.b16 %v360
        %v555 = vunpack.c.l.b16 %v361
        %v556 = vunpack.c.h.b16 %v361
        %v557 = vunpack.c.l.b16 %v362
        %v558 = vunpack.c.h.b16 %v362
        %v559 = vunpack.c.l.b16 %v363
        %v560 = vunpack.c.h.b16 %v363
        %v561 = vunpack.c.l.b16 %v364
        %v562 = vunpack.c.h.b16 %v364
        %v563 = vunpack.c.l.b16 %v365
        %v564 = vunpack.c.h.b16 %v365
        %v565 = vunpack.c.l.b16 %v366
        %v566 = vunpack.c.h.b16 %v366
        %v567 = vunpack.c.l.b16 %v367
        %v568 = vunpack.c.h.b16 %v367
        %v569 = vunpack.c.l.b16 %v368
        %v570 = vunpack.c.h.b16 %v368
        %v571 = vpack.c.b16 %v447, %v443
        %v572 = vpack.c.b16 %v448, %v444
        %v573 = vpack.c.b16 %v449, %v445
        %v574 = vpack.c.b16 %v450, %v446
        %v575 = vpack.c.b16 %v455, %v451
        %v576 = vpack.c.b16 %v456, %v452
        %v577 = vpack.c.b16 %v457, %v453
        %v578 = vpack.c.b16 %v458, %v454
        %v579 = vpack.c.b16 %v463, %v459
        %v580 = vpack.c.b16 %v464, %v460
        %v581 = vpack.c.b16 %v465, %v461
        %v582 = vpack.c.b16 %v466, %v462
        %v583 = vpack.c.b16 %v471, %v467
        %v584 = vpack.c.b16 %v472, %v468
        %v585 = vpack.c.b16 %v473, %v469
        %v586 = vpack.c.b16 %v474, %v470
        %v587 = vpack.c.b16 %v479, %v475
        %v588 = vpack.c.b16 %v480, %v476
        %v589 = vpack.c.b16 %v481, %v477
        %v590 = vpack.c.b16 %v482, %v478
        %v591 = vpack.c.b16 %v487, %v483
        %v592 = vpack.c.b16 %v488, %v484
        %v593 = vpack.c.b16 %v489, %v485
        %v594 = vpack.c.b16 %v490, %v486
        %v595 = vpack.c.b16 %v495, %v491
        %v596 = vpack.c.b16 %v496, %v492
        %v597 = vpack.c.b16 %v497, %v493
        %v598 = vpack.c.b16 %v498, %v494
        %v599 = vpack.c.b16 %v503, %v499
        %v600 = vpack.c.b16 %v504, %v500
        %v601 = vpack.c.b16 %v505, %v501
        %v602 = vpack.c.b16 %v506, %v502
        %v603 = vpack.c.b16 %v511, %v507
        %v604 = vpack.c.b16 %v512, %v508
        %v605 = vpack.c.b16 %v513, %v509
        %v606 = vpack.c.b16 %v514, %v510
        %v607 = vpack.c.b16 %v519, %v515
        %v608 = vpack.c.b16 %v520, %v516
        %v609 = vpack.c.b16 %v521, %v517
        %v610 = vpack.c.b16 %v522, %v518
        %v611 = vpack.c.b16 %v527, %v523
        %v612 = vpack.c.b16 %v528, %v524
        %v613 = vpack.c.b16 %v529, %v525
        %v614 = vpack.c.b16 %v530, %v526
        %v615 = vpack.c.b16 %v535, %v531
        %v616 = vpack.c.b16 %v536, %v532
        %v617 = vpack.c.b16 %v537, %v533
        %v618 = vpack.c.b16 %v538, %v534
        %v619 = vpack.c.b16 %v543, %v539
        %v620 = vpack.c.b16 %v544, %v540
        %v621 = vpack.c.b16 %v545, %v541
        %v622 = vpack.c.b16 %v546, %v542
        %v623 = vpack.c.b16 %v551, %v547
        %v624 = vpack.c.b16 %v552, %v548
        %v625 = vpack.c.b16 %v553, %v549
        %v626 = vpack.c.b16 %v554, %v550
        %v627 = vpack.c.b16 %v559, %v555
        %v628 = vpack.c.b16 %v560, %v556
        %v629 = vpack.c.b16 %v561, %v557
        %v630 = vpack.c.b16 %v562, %v558
        %v631 = vpack.c.b16 %v567, %v563
        %v632 = vpack.c.b16 %v568, %v564
        %v633 = vpack.c.b16 %v569, %v565
        %v634 = vpack.c.b16 %v570, %v566
        %699 = vmatpush.bf16.msra.mxu0 %v599
        %700 = vmatpush.bf16.msra.mxu0 %v595
        %701 = vmatpush.bf16.msra.mxu0 %v591
        %702 = vmatpush.bf16.msra.mxu0 %v587
        %703 = vmatpush.bf16.msra.mxu0 %v583
        %704 = vmatpush.bf16.msra.mxu0 %v579
        %705 = vmatpush.bf16.msra.mxu0 %v575
        %706 = vmatpush.bf16.msra.mxu0 %v571
        %707 = vmatmul.bf16.gmra.mxu0 %v302
        %v708 = vpop.f32.mrf.mxu0
        %v709 = vadd.f32 %v371, %v708
        %v710 = vpop.f32.mrf.mxu0
        %711 = vdwg.mxu0
        %712 = vmatpush.bf16.msra.mxu0 %v631
        %713 = vmatpush.bf16.msra.mxu0 %v627
        %714 = vmatpush.bf16.msra.mxu0 %v623
        %715 = vmatpush.bf16.msra.mxu0 %v619
        %716 = vmatpush.bf16.msra.mxu0 %v615
        %717 = vmatpush.bf16.msra.mxu0 %v611
        %718 = vmatpush.bf16.msra.mxu0 %v607
        %719 = vmatpush.bf16.msra.mxu0 %v603
        %720 = vmatmul.bf16.gmra.mxu0 %v304
        %v721 = vpop.f32.mrf.mxu0
        %v722 = vadd.f32 %v709, %v721
        %v723 = vpop.f32.mrf.mxu0
        %724 = vdwg.mxu0
        %725 = vmatpush.bf16.msra.mxu0 %v600
        %726 = vmatpush.bf16.msra.mxu0 %v596
        %727 = vmatpush.bf16.msra.mxu0 %v592
        %728 = vmatpush.bf16.msra.mxu0 %v588
        %729 = vmatpush.bf16.msra.mxu0 %v584
        %730 = vmatpush.bf16.msra.mxu0 %v580
        %731 = vmatpush.bf16.msra.mxu0 %v576
        %732 = vmatpush.bf16.msra.mxu0 %v572
        %733 = vmatmul.bf16.gmra.mxu0 %v302
        %v734 = vpop.f32.mrf.mxu0
        %v735 = vadd.f32 %v372, %v734
        %v736 = vpop.f32.mrf.mxu0
        %737 = vdwg.mxu0
        %738 = vmatpush.bf16.msra.mxu0 %v632
        %739 = vmatpush.bf16.msra.mxu0 %v628
        %740 = vmatpush.bf16.msra.mxu0 %v624
        %741 = vmatpush.bf16.msra.mxu0 %v620
        %742 = vmatpush.bf16.msra.mxu0 %v616
        %743 = vmatpush.bf16.msra.mxu0 %v612
        %744 = vmatpush.bf16.msra.mxu0 %v608
        %745 = vmatpush.bf16.msra.mxu0 %v604
        %746 = vmatmul.bf16.gmra.mxu0 %v304
        %v747 = vpop.f32.mrf.mxu0
        %v748 = vadd.f32 %v735, %v747
        %v749 = vpop.f32.mrf.mxu0
        %750 = vdwg.mxu0
        %751 = vmatpush.bf16.msra.mxu0 %v601
        %752 = vmatpush.bf16.msra.mxu0 %v597
        %753 = vmatpush.bf16.msra.mxu0 %v593
        %754 = vmatpush.bf16.msra.mxu0 %v589
        %755 = vmatpush.bf16.msra.mxu0 %v585
        %756 = vmatpush.bf16.msra.mxu0 %v581
        %757 = vmatpush.bf16.msra.mxu0 %v577
        %758 = vmatpush.bf16.msra.mxu0 %v573
        %759 = vmatmul.bf16.gmra.mxu0 %v302
        %v760 = vpop.f32.mrf.mxu0
        %v761 = vadd.f32 %v373, %v760
        %v762 = vpop.f32.mrf.mxu0
        %763 = vdwg.mxu0
        %764 = vmatpush.bf16.msra.mxu0 %v633
        %765 = vmatpush.bf16.msra.mxu0 %v629
        %766 = vmatpush.bf16.msra.mxu0 %v625
        %767 = vmatpush.bf16.msra.mxu0 %v621
        %768 = vmatpush.bf16.msra.mxu0 %v617
        %769 = vmatpush.bf16.msra.mxu0 %v613
        %770 = vmatpush.bf16.msra.mxu0 %v609
        %771 = vmatpush.bf16.msra.mxu0 %v605
        %772 = vmatmul.bf16.gmra.mxu0 %v304
        %v773 = vpop.f32.mrf.mxu0
        %v774 = vadd.f32 %v761, %v773
        %v775 = vpop.f32.mrf.mxu0
        %776 = vdwg.mxu0
        %777 = vmatpush.bf16.msra.mxu0 %v602
        %778 = vmatpush.bf16.msra.mxu0 %v598
        %779 = vmatpush.bf16.msra.mxu0 %v594
        %780 = vmatpush.bf16.msra.mxu0 %v590
        %781 = vmatpush.bf16.msra.mxu0 %v586
        %782 = vmatpush.bf16.msra.mxu0 %v582
        %783 = vmatpush.bf16.msra.mxu0 %v578
        %784 = vmatpush.bf16.msra.mxu0 %v574
        %785 = vmatmul.bf16.gmra.mxu0 %v302
        %v786 = vpop.f32.mrf.mxu0
        %v787 = vadd.f32 %v374, %v786
        %v788 = vpop.f32.mrf.mxu0
        %789 = vdwg.mxu0
        %790 = vmatpush.bf16.msra.mxu0 %v634
        %791 = vmatpush.bf16.msra.mxu0 %v630
        %792 = vmatpush.bf16.msra.mxu0 %v626
        %793 = vmatpush.bf16.msra.mxu0 %v622
        %794 = vmatpush.bf16.msra.mxu0 %v618
        %795 = vmatpush.bf16.msra.mxu0 %v614
        %796 = vmatpush.bf16.msra.mxu0 %v610
        %797 = vmatpush.bf16.msra.mxu0 %v606
        %798 = vmatmul.bf16.gmra.mxu0 %v304
        %v799 = vpop.f32.mrf.mxu0
        %v800 = vadd.f32 %v787, %v799
        %v801 = vpop.f32.mrf.mxu0
        %802 = vdwg.mxu0
        %v803 = vxor.u32 %v722, 2147483648
        %v804 = vmul.f32 %v803, 1.442695
        %v805 = vpow.pop %v804
        %v806 = vadd.f32 %v805, 1.0
        %v807 = vrcp.pop %v806
        %v808 = vmul.f32 %v806, %v807
        %v809 = vsub.f32 1.0, %v808
        %v810 = vmul.f32 %v807, %v809
        %v811 = vadd.f32 %v807, %v810
        %vm812 = vweird.f32 %v806
        %vm813 = vweird.f32 %v807
        %vm814 = vmor %vm812, %vm813
        %v815 = vsel %vm814, %v807, %v811
        %v816 = vand.u32 2147483647, %v806
        %vm817 = vcmp.eq.f32.partialorder %v816, 8.507059e+37
        %v818 = vand.u32 %v806, 2147483648
        %v819 = vor.u32 1.1754944e-38, %v818
        %v820 = vsel %vm817, %v819, %v815
        %v821 = vmul.f32 1.0, %v820
        %v822 = vxor.u32 %v748, 2147483648
        %v823 = vmul.f32 %v822, 1.442695
        %v824 = vpow.pop %v823
        %v825 = vadd.f32 %v824, 1.0
        %v826 = vrcp.pop %v825
        %v827 = vmul.f32 %v825, %v826
        %v828 = vsub.f32 1.0, %v827
        %v829 = vmul.f32 %v826, %v828
        %v830 = vadd.f32 %v826, %v829
        %vm831 = vweird.f32 %v825
        %vm832 = vweird.f32 %v826
        %vm833 = vmor %vm831, %vm832
        %v834 = vsel %vm833, %v826, %v830
        %v835 = vand.u32 2147483647, %v825
        %vm836 = vcmp.eq.f32.partialorder %v835, 8.507059e+37
        %v837 = vand.u32 %v825, 2147483648
        %v838 = vor.u32 1.1754944e-38, %v837
        %v839 = vsel %vm836, %v838, %v834
        %v840 = vmul.f32 1.0, %v839
        %v841 = vtanh.pop %v774
        %v842 = vxor.u32 %v800, 2147483648
        %v843 = vmul.f32 %v842, 1.442695
        %v844 = vpow.pop %v843
        %v845 = vadd.f32 %v844, 1.0
        %v846 = vrcp.pop %v845
        %v847 = vmul.f32 %v845, %v846
        %v848 = vsub.f32 1.0, %v847
        %v849 = vmul.f32 %v846, %v848
        %v850 = vadd.f32 %v846, %v849
        %vm851 = vweird.f32 %v845
        %vm852 = vweird.f32 %v846
        %vm853 = vmor %vm851, %vm852
        %v854 = vsel %vm853, %v846, %v850
        %v855 = vand.u32 2147483647, %v845
        %vm856 = vcmp.eq.f32.partialorder %v855, 8.507059e+37
        %v857 = vand.u32 %v845, 2147483648
        %v858 = vor.u32 1.1754944e-38, %v857
        %v859 = vsel %vm856, %v858, %v854
        %v860 = vmul.f32 1.0, %v859
        %v861 = vld [vmem:[#allocation3] sm:$0xff]
        %v862 = vmul.f32 %v840, %v861
        %v863 = vmul.f32 %v821, %v841
        %v864 = vadd.f32 %v862, %v863
        %v865 = vtanh.pop %v864
        %v866 = vmul.f32 %v860, %v865
        %867 = vst [vmem:[#allocation3] sm:$0xff] %v864
        %868 = vst [vmem:[#allocation2] sm:$0xff] %v866
        %v869 = vpack.c.bf16 %v866, %v866
        %870 = vst [vmem:[%s292] sm:$0xf] %v869
        %s871 = scalar_lea.vmem %s286, 4
        %v872 = vld [vmem:[%s871] sm:$0xf]
        %v873 = vld [vmem:[#allocation2] sm:$0xff]
        %v874 = vpack.c.bf16 %v873, %v873
        %v875 = vld [vmem:[#allocation4] sm:$0xff]
        %v876 = vld [vmem:[#allocation4 + $0x8] sm:$0xff]
        %v877 = vld [vmem:[#allocation4 + $0x10] sm:$0xff]
        %v878 = vld [vmem:[#allocation4 + $0x18] sm:$0xff]
        %v879 = vld [vmem:[#allocation4 + $0x20] sm:$0xff]
        %v880 = vld [vmem:[#allocation4 + $0x28] sm:$0xff]
        %v881 = vld [vmem:[#allocation4 + $0x30] sm:$0xff]
        %v882 = vld [vmem:[#allocation4 + $0x38] sm:$0xff]
        %v883 = vld [vmem:[#allocation4 + $0x40] sm:$0xff]
        %v884 = vld [vmem:[#allocation4 + $0x48] sm:$0xff]
        %v885 = vld [vmem:[#allocation4 + $0x50] sm:$0xff]
        %v886 = vld [vmem:[#allocation4 + $0x58] sm:$0xff]
        %v887 = vld [vmem:[#allocation4 + $0x60] sm:$0xff]
        %v888 = vld [vmem:[#allocation4 + $0x68] sm:$0xff]
        %v889 = vld [vmem:[#allocation4 + $0x70] sm:$0xff]
        %v890 = vld [vmem:[#allocation4 + $0x78] sm:$0xff]
        %v891 = vld [vmem:[#allocation4 + $0x80] sm:$0xff]
        %v892 = vld [vmem:[#allocation4 + $0x88] sm:$0xff]
        %v893 = vld [vmem:[#allocation4 + $0x90] sm:$0xff]
        %v894 = vld [vmem:[#allocation4 + $0x98] sm:$0xff]
        %v895 = vld [vmem:[#allocation4 + $0xa0] sm:$0xff]
        %v896 = vld [vmem:[#allocation4 + $0xa8] sm:$0xff]
        %v897 = vld [vmem:[#allocation4 + $0xb0] sm:$0xff]
        %v898 = vld [vmem:[#allocation4 + $0xb8] sm:$0xff]
        %v899 = vld [vmem:[#allocation4 + $0xc0] sm:$0xff]
        %v900 = vld [vmem:[#allocation4 + $0xc8] sm:$0xff]
        %v901 = vld [vmem:[#allocation4 + $0xd0] sm:$0xff]
        %v902 = vld [vmem:[#allocation4 + $0xd8] sm:$0xff]
        %v903 = vld [vmem:[#allocation4 + $0xe0] sm:$0xff]
        %v904 = vld [vmem:[#allocation4 + $0xe8] sm:$0xff]
        %v905 = vld [vmem:[#allocation4 + $0xf0] sm:$0xff]
        %v906 = vld [vmem:[#allocation4 + $0xf8] sm:$0xff]
        %v907 = vld [vmem:[#allocation4 + $0x100] sm:$0xff]
        %v908 = vld [vmem:[#allocation4 + $0x108] sm:$0xff]
        %v909 = vld [vmem:[#allocation4 + $0x110] sm:$0xff]
        %v910 = vld [vmem:[#allocation4 + $0x118] sm:$0xff]
        %v911 = vld [vmem:[#allocation4 + $0x120] sm:$0xff]
        %v912 = vld [vmem:[#allocation4 + $0x128] sm:$0xff]
        %v913 = vld [vmem:[#allocation4 + $0x130] sm:$0xff]
        %v914 = vld [vmem:[#allocation4 + $0x138] sm:$0xff]
        %v915 = vld [vmem:[#allocation4 + $0x140] sm:$0xff]
        %v916 = vld [vmem:[#allocation4 + $0x148] sm:$0xff]
        %v917 = vld [vmem:[#allocation4 + $0x150] sm:$0xff]
        %v918 = vld [vmem:[#allocation4 + $0x158] sm:$0xff]
        %v919 = vld [vmem:[#allocation4 + $0x160] sm:$0xff]
        %v920 = vld [vmem:[#allocation4 + $0x168] sm:$0xff]
        %v921 = vld [vmem:[#allocation4 + $0x170] sm:$0xff]
        %v922 = vld [vmem:[#allocation4 + $0x178] sm:$0xff]
        %v923 = vld [vmem:[#allocation4 + $0x180] sm:$0xff]
        %v924 = vld [vmem:[#allocation4 + $0x188] sm:$0xff]
        %v925 = vld [vmem:[#allocation4 + $0x190] sm:$0xff]
        %v926 = vld [vmem:[#allocation4 + $0x198] sm:$0xff]
        %v927 = vld [vmem:[#allocation4 + $0x1a0] sm:$0xff]
        %v928 = vld [vmem:[#allocation4 + $0x1a8] sm:$0xff]
        %v929 = vld [vmem:[#allocation4 + $0x1b0] sm:$0xff]
        %v930 = vld [vmem:[#allocation4 + $0x1b8] sm:$0xff]
        %v931 = vld [vmem:[#allocation4 + $0x1c0] sm:$0xff]
        %v932 = vld [vmem:[#allocation4 + $0x1c8] sm:$0xff]
        %v933 = vld [vmem:[#allocation4 + $0x1d0] sm:$0xff]
        %v934 = vld [vmem:[#allocation4 + $0x1d8] sm:$0xff]
        %v935 = vld [vmem:[#allocation4 + $0x1e0] sm:$0xff]
        %v936 = vld [vmem:[#allocation4 + $0x1e8] sm:$0xff]
        %v937 = vld [vmem:[#allocation4 + $0x1f0] sm:$0xff]
        %v938 = vld [vmem:[#allocation4 + $0x1f8] sm:$0xff]
        %v939 = vld [vmem:[%s2] sm:$0xf]
        %v941 = vperm.slane %v939, 0
        %v942 = vperm.slane %v939, 1
        %v943 = vperm.slane %v939, 2
        %v944 = vperm.slane %v939, 3
        %v1013 = vunpack.c.l.b16 %v875
        %v1014 = vunpack.c.h.b16 %v875
        %v1015 = vunpack.c.l.b16 %v876
        %v1016 = vunpack.c.h.b16 %v876
        %v1017 = vunpack.c.l.b16 %v877
        %v1018 = vunpack.c.h.b16 %v877
        %v1019 = vunpack.c.l.b16 %v878
        %v1020 = vunpack.c.h.b16 %v878
        %v1021 = vunpack.c.l.b16 %v879
        %v1022 = vunpack.c.h.b16 %v879
        %v1023 = vunpack.c.l.b16 %v880
        %v1024 = vunpack.c.h.b16 %v880
        %v1025 = vunpack.c.l.b16 %v881
        %v1026 = vunpack.c.h.b16 %v881
        %v1027 = vunpack.c.l.b16 %v882
        %v1028 = vunpack.c.h.b16 %v882
        %v1029 = vunpack.c.l.b16 %v883
        %v1030 = vunpack.c.h.b16 %v883
        %v1031 = vunpack.c.l.b16 %v884
        %v1032 = vunpack.c.h.b16 %v884
        %v1033 = vunpack.c.l.b16 %v885
        %v1034 = vunpack.c.h.b16 %v885
        %v1035 = vunpack.c.l.b16 %v886
        %v1036 = vunpack.c.h.b16 %v886
        %v1037 = vunpack.c.l.b16 %v887
        %v1038 = vunpack.c.h.b16 %v887
        %v1039 = vunpack.c.l.b16 %v888
        %v1040 = vunpack.c.h.b16 %v888
        %v1041 = vunpack.c.l.b16 %v889
        %v1042 = vunpack.c.h.b16 %v889
        %v1043 = vunpack.c.l.b16 %v890
        %v1044 = vunpack.c.h.b16 %v890
        %v1045 = vunpack.c.l.b16 %v891
        %v1046 = vunpack.c.h.b16 %v891
        %v1047 = vunpack.c.l.b16 %v892
        %v1048 = vunpack.c.h.b16 %v892
        %v1049 = vunpack.c.l.b16 %v893
        %v1050 = vunpack.c.h.b16 %v893
        %v1051 = vunpack.c.l.b16 %v894
        %v1052 = vunpack.c.h.b16 %v894
        %v1053 = vunpack.c.l.b16 %v895
        %v1054 = vunpack.c.h.b16 %v895
        %v1055 = vunpack.c.l.b16 %v896
        %v1056 = vunpack.c.h.b16 %v896
        %v1057 = vunpack.c.l.b16 %v897
        %v1058 = vunpack.c.h.b16 %v897
        %v1059 = vunpack.c.l.b16 %v898
        %v1060 = vunpack.c.h.b16 %v898
        %v1061 = vunpack.c.l.b16 %v899
        %v1062 = vunpack.c.h.b16 %v899
        %v1063 = vunpack.c.l.b16 %v900
        %v1064 = vunpack.c.h.b16 %v900
        %v1065 = vunpack.c.l.b16 %v901
        %v1066 = vunpack.c.h.b16 %v901
        %v1067 = vunpack.c.l.b16 %v902
        %v1068 = vunpack.c.h.b16 %v902
        %v1069 = vunpack.c.l.b16 %v903
        %v1070 = vunpack.c.h.b16 %v903
        %v1071 = vunpack.c.l.b16 %v904
        %v1072 = vunpack.c.h.b16 %v904
        %v1073 = vunpack.c.l.b16 %v905
        %v1074 = vunpack.c.h.b16 %v905
        %v1075 = vunpack.c.l.b16 %v906
        %v1076 = vunpack.c.h.b16 %v906
        %v1077 = vunpack.c.l.b16 %v907
        %v1078 = vunpack.c.h.b16 %v907
        %v1079 = vunpack.c.l.b16 %v908
        %v1080 = vunpack.c.h.b16 %v908
        %v1081 = vunpack.c.l.b16 %v909
        %v1082 = vunpack.c.h.b16 %v909
        %v1083 = vunpack.c.l.b16 %v910
        %v1084 = vunpack.c.h.b16 %v910
        %v1085 = vunpack.c.l.b16 %v911
        %v1086 = vunpack.c.h.b16 %v911
        %v1087 = vunpack.c.l.b16 %v912
        %v1088 = vunpack.c.h.b16 %v912
        %v1089 = vunpack.c.l.b16 %v913
        %v1090 = vunpack.c.h.b16 %v913
        %v1091 = vunpack.c.l.b16 %v914
        %v1092 = vunpack.c.h.b16 %v914
        %v1093 = vunpack.c.l.b16 %v915
        %v1094 = vunpack.c.h.b16 %v915
        %v1095 = vunpack.c.l.b16 %v916
        %v1096 = vunpack.c.h.b16 %v916
        %v1097 = vunpack.c.l.b16 %v917
        %v1098 = vunpack.c.h.b16 %v917
        %v1099 = vunpack.c.l.b16 %v918
        %v1100 = vunpack.c.h.b16 %v918
        %v1101 = vunpack.c.l.b16 %v919
        %v1102 = vunpack.c.h.b16 %v919
        %v1103 = vunpack.c.l.b16 %v920
        %v1104 = vunpack.c.h.b16 %v920
        %v1105 = vunpack.c.l.b16 %v921
        %v1106 = vunpack.c.h.b16 %v921
        %v1107 = vunpack.c.l.b16 %v922
        %v1108 = vunpack.c.h.b16 %v922
        %v1109 = vunpack.c.l.b16 %v923
        %v1110 = vunpack.c.h.b16 %v923
        %v1111 = vunpack.c.l.b16 %v924
        %v1112 = vunpack.c.h.b16 %v924
        %v1113 = vunpack.c.l.b16 %v925
        %v1114 = vunpack.c.h.b16 %v925
        %v1115 = vunpack.c.l.b16 %v926
        %v1116 = vunpack.c.h.b16 %v926
        %v1117 = vunpack.c.l.b16 %v927
        %v1118 = vunpack.c.h.b16 %v927
        %v1119 = vunpack.c.l.b16 %v928
        %v1120 = vunpack.c.h.b16 %v928
        %v1121 = vunpack.c.l.b16 %v929
        %v1122 = vunpack.c.h.b16 %v929
        %v1123 = vunpack.c.l.b16 %v930
        %v1124 = vunpack.c.h.b16 %v930
        %v1125 = vunpack.c.l.b16 %v931
        %v1126 = vunpack.c.h.b16 %v931
        %v1127 = vunpack.c.l.b16 %v932
        %v1128 = vunpack.c.h.b16 %v932
        %v1129 = vunpack.c.l.b16 %v933
        %v1130 = vunpack.c.h.b16 %v933
        %v1131 = vunpack.c.l.b16 %v934
        %v1132 = vunpack.c.h.b16 %v934
        %v1133 = vunpack.c.l.b16 %v935
        %v1134 = vunpack.c.h.b16 %v935
        %v1135 = vunpack.c.l.b16 %v936
        %v1136 = vunpack.c.h.b16 %v936
        %v1137 = vunpack.c.l.b16 %v937
        %v1138 = vunpack.c.h.b16 %v937
        %v1139 = vunpack.c.l.b16 %v938
        %v1140 = vunpack.c.h.b16 %v938
        %v1141 = vpack.c.b16 %v1017, %v1013
        %v1142 = vpack.c.b16 %v1018, %v1014
        %v1143 = vpack.c.b16 %v1019, %v1015
        %v1144 = vpack.c.b16 %v1020, %v1016
        %v1145 = vpack.c.b16 %v1025, %v1021
        %v1146 = vpack.c.b16 %v1026, %v1022
        %v1147 = vpack.c.b16 %v1027, %v1023
        %v1148 = vpack.c.b16 %v1028, %v1024
        %v1149 = vpack.c.b16 %v1033, %v1029
        %v1150 = vpack.c.b16 %v1034, %v1030
        %v1151 = vpack.c.b16 %v1035, %v1031
        %v1152 = vpack.c.b16 %v1036, %v1032
        %v1153 = vpack.c.b16 %v1041, %v1037
        %v1154 = vpack.c.b16 %v1042, %v1038
        %v1155 = vpack.c.b16 %v1043, %v1039
        %v1156 = vpack.c.b16 %v1044, %v1040
        %v1157 = vpack.c.b16 %v1049, %v1045
        %v1158 = vpack.c.b16 %v1050, %v1046
        %v1159 = vpack.c.b16 %v1051, %v1047
        %v1160 = vpack.c.b16 %v1052, %v1048
        %v1161 = vpack.c.b16 %v1057, %v1053
        %v1162 = vpack.c.b16 %v1058, %v1054
        %v1163 = vpack.c.b16 %v1059, %v1055
        %v1164 = vpack.c.b16 %v1060, %v1056
        %v1165 = vpack.c.b16 %v1065, %v1061
        %v1166 = vpack.c.b16 %v1066, %v1062
        %v1167 = vpack.c.b16 %v1067, %v1063
        %v1168 = vpack.c.b16 %v1068, %v1064
        %v1169 = vpack.c.b16 %v1073, %v1069
        %v1170 = vpack.c.b16 %v1074, %v1070
        %v1171 = vpack.c.b16 %v1075, %v1071
        %v1172 = vpack.c.b16 %v1076, %v1072
        %v1173 = vpack.c.b16 %v1081, %v1077
        %v1174 = vpack.c.b16 %v1082, %v1078
        %v1175 = vpack.c.b16 %v1083, %v1079
        %v1176 = vpack.c.b16 %v1084, %v1080
        %v1177 = vpack.c.b16 %v1089, %v1085
        %v1178 = vpack.c.b16 %v1090, %v1086
        %v1179 = vpack.c.b16 %v1091, %v1087
        %v1180 = vpack.c.b16 %v1092, %v1088
        %v1181 = vpack.c.b16 %v1097, %v1093
        %v1182 = vpack.c.b16 %v1098, %v1094
        %v1183 = vpack.c.b16 %v1099, %v1095
        %v1184 = vpack.c.b16 %v1100, %v1096
        %v1185 = vpack.c.b16 %v1105, %v1101
        %v1186 = vpack.c.b16 %v1106, %v1102
        %v1187 = vpack.c.b16 %v1107, %v1103
        %v1188 = vpack.c.b16 %v1108, %v1104
        %v1189 = vpack.c.b16 %v1113, %v1109
        %v1190 = vpack.c.b16 %v1114, %v1110
        %v1191 = vpack.c.b16 %v1115, %v1111
        %v1192 = vpack.c.b16 %v1116, %v1112
        %v1193 = vpack.c.b16 %v1121, %v1117
        %v1194 = vpack.c.b16 %v1122, %v1118
        %v1195 = vpack.c.b16 %v1123, %v1119
        %v1196 = vpack.c.b16 %v1124, %v1120
        %v1197 = vpack.c.b16 %v1129, %v1125
        %v1198 = vpack.c.b16 %v1130, %v1126
        %v1199 = vpack.c.b16 %v1131, %v1127
        %v1200 = vpack.c.b16 %v1132, %v1128
        %v1201 = vpack.c.b16 %v1137, %v1133
        %v1202 = vpack.c.b16 %v1138, %v1134
        %v1203 = vpack.c.b16 %v1139, %v1135
        %v1204 = vpack.c.b16 %v1140, %v1136
        %1269 = vmatpush.bf16.msra.mxu0 %v1169
        %1270 = vmatpush.bf16.msra.mxu0 %v1165
        %1271 = vmatpush.bf16.msra.mxu0 %v1161
        %1272 = vmatpush.bf16.msra.mxu0 %v1157
        %1273 = vmatpush.bf16.msra.mxu0 %v1153
        %1274 = vmatpush.bf16.msra.mxu0 %v1149
        %1275 = vmatpush.bf16.msra.mxu0 %v1145
        %1276 = vmatpush.bf16.msra.mxu0 %v1141
        %1277 = vmatmul.bf16.gmra.mxu0 %v872
        %v1278 = vpop.f32.mrf.mxu0
        %v1279 = vadd.f32 %v941, %v1278
        %v1280 = vpop.f32.mrf.mxu0
        %1281 = vdwg.mxu0
        %1282 = vmatpush.bf16.msra.mxu0 %v1201
        %1283 = vmatpush.bf16.msra.mxu0 %v1197
        %1284 = vmatpush.bf16.msra.mxu0 %v1193
        %1285 = vmatpush.bf16.msra.mxu0 %v1189
        %1286 = vmatpush.bf16.msra.mxu0 %v1185
        %1287 = vmatpush.bf16.msra.mxu0 %v1181
        %1288 = vmatpush.bf16.msra.mxu0 %v1177
        %1289 = vmatpush.bf16.msra.mxu0 %v1173
        %1290 = vmatmul.bf16.gmra.mxu0 %v874
        %v1291 = vpop.f32.mrf.mxu0
        %v1292 = vadd.f32 %v1279, %v1291
        %v1293 = vpop.f32.mrf.mxu0
        %1294 = vdwg.mxu0
        %1295 = vmatpush.bf16.msra.mxu0 %v1170
        %1296 = vmatpush.bf16.msra.mxu0 %v1166
        %1297 = vmatpush.bf16.msra.mxu0 %v1162
        %1298 = vmatpush.bf16.msra.mxu0 %v1158
        %1299 = vmatpush.bf16.msra.mxu0 %v1154
        %1300 = vmatpush.bf16.msra.mxu0 %v1150
        %1301 = vmatpush.bf16.msra.mxu0 %v1146
        %1302 = vmatpush.bf16.msra.mxu0 %v1142
        %1303 = vmatmul.bf16.gmra.mxu0 %v872
        %v1304 = vpop.f32.mrf.mxu0
        %v1305 = vadd.f32 %v942, %v1304
        %v1306 = vpop.f32.mrf.mxu0
        %1307 = vdwg.mxu0
        %1308 = vmatpush.bf16.msra.mxu0 %v1202
        %1309 = vmatpush.bf16.msra.mxu0 %v1198
        %1310 = vmatpush.bf16.msra.mxu0 %v1194
        %1311 = vmatpush.bf16.msra.mxu0 %v1190
        %1312 = vmatpush.bf16.msra.mxu0 %v1186
        %1313 = vmatpush.bf16.msra.mxu0 %v1182
        %1314 = vmatpush.bf16.msra.mxu0 %v1178
        %1315 = vmatpush.bf16.msra.mxu0 %v1174
        %1316 = vmatmul.bf16.gmra.mxu0 %v874
        %v1317 = vpop.f32.mrf.mxu0
        %v1318 = vadd.f32 %v1305, %v1317
        %v1319 = vpop.f32.mrf.mxu0
        %1320 = vdwg.mxu0
        %1321 = vmatpush.bf16.msra.mxu0 %v1171
        %1322 = vmatpush.bf16.msra.mxu0 %v1167
        %1323 = vmatpush.bf16.msra.mxu0 %v1163
        %1324 = vmatpush.bf16.msra.mxu0 %v1159
        %1325 = vmatpush.bf16.msra.mxu0 %v1155
        %1326 = vmatpush.bf16.msra.mxu0 %v1151
        %1327 = vmatpush.bf16.msra.mxu0 %v1147
        %1328 = vmatpush.bf16.msra.mxu0 %v1143
        %1329 = vmatmul.bf16.gmra.mxu0 %v872
        %v1330 = vpop.f32.mrf.mxu0
        %v1331 = vadd.f32 %v943, %v1330
        %v1332 = vpop.f32.mrf.mxu0
        %1333 = vdwg.mxu0
        %1334 = vmatpush.bf16.msra.mxu0 %v1203
        %1335 = vmatpush.bf16.msra.mxu0 %v1199
        %1336 = vmatpush.bf16.msra.mxu0 %v1195
        %1337 = vmatpush.bf16.msra.mxu0 %v1191
        %1338 = vmatpush.bf16.msra.mxu0 %v1187
        %1339 = vmatpush.bf16.msra.mxu0 %v1183
        %1340 = vmatpush.bf16.msra.mxu0 %v1179
        %1341 = vmatpush.bf16.msra.mxu0 %v1175
        %1342 = vmatmul.bf16.gmra.mxu0 %v874
        %v1343 = vpop.f32.mrf.mxu0
        %v1344 = vadd.f32 %v1331, %v1343
        %v1345 = vpop.f32.mrf.mxu0
        %1346 = vdwg.mxu0
        %1347 = vmatpush.bf16.msra.mxu0 %v1172
        %1348 = vmatpush.bf16.msra.mxu0 %v1168
        %1349 = vmatpush.bf16.msra.mxu0 %v1164
        %1350 = vmatpush.bf16.msra.mxu0 %v1160
        %1351 = vmatpush.bf16.msra.mxu0 %v1156
        %1352 = vmatpush.bf16.msra.mxu0 %v1152
        %1353 = vmatpush.bf16.msra.mxu0 %v1148
        %1354 = vmatpush.bf16.msra.mxu0 %v1144
        %1355 = vmatmul.bf16.gmra.mxu0 %v872
        %v1356 = vpop.f32.mrf.mxu0
        %v1357 = vadd.f32 %v944, %v1356
        %v1358 = vpop.f32.mrf.mxu0
        %1359 = vdwg.mxu0
        %1360 = vmatpush.bf16.msra.mxu0 %v1204
        %1361 = vmatpush.bf16.msra.mxu0 %v1200
        %1362 = vmatpush.bf16.msra.mxu0 %v1196
        %1363 = vmatpush.bf16.msra.mxu0 %v1192
        %1364 = vmatpush.bf16.msra.mxu0 %v1188
        %1365 = vmatpush.bf16.msra.mxu0 %v1184
        %1366 = vmatpush.bf16.msra.mxu0 %v1180
        %1367 = vmatpush.bf16.msra.mxu0 %v1176
        %1368 = vmatmul.bf16.gmra.mxu0 %v874
        %v1369 = vpop.f32.mrf.mxu0
        %v1370 = vadd.f32 %v1357, %v1369
        %v1371 = vpop.f32.mrf.mxu0
        %1372 = vdwg.mxu0
        %v1373 = vxor.u32 %v1292, 2147483648
        %v1374 = vmul.f32 %v1373, 1.442695
        %v1375 = vpow.pop %v1374
        %v1376 = vadd.f32 %v1375, 1.0
        %v1377 = vrcp.pop %v1376
        %v1378 = vmul.f32 %v1376, %v1377
        %v1379 = vsub.f32 1.0, %v1378
        %v1380 = vmul.f32 %v1377, %v1379
        %v1381 = vadd.f32 %v1377, %v1380
        %vm1382 = vweird.f32 %v1376
        %vm1383 = vweird.f32 %v1377
        %vm1384 = vmor %vm1382, %vm1383
        %v1385 = vsel %vm1384, %v1377, %v1381
        %v1386 = vand.u32 2147483647, %v1376
        %vm1387 = vcmp.eq.f32.partialorder %v1386, 8.507059e+37
        %v1388 = vand.u32 %v1376, 2147483648
        %v1389 = vor.u32 1.1754944e-38, %v1388
        %v1390 = vsel %vm1387, %v1389, %v1385
        %v1391 = vmul.f32 1.0, %v1390
        %v1392 = vxor.u32 %v1318, 2147483648
        %v1393 = vmul.f32 %v1392, 1.442695
        %v1394 = vpow.pop %v1393
        %v1395 = vadd.f32 %v1394, 1.0
        %v1396 = vrcp.pop %v1395
        %v1397 = vmul.f32 %v1395, %v1396
        %v1398 = vsub.f32 1.0, %v1397
        %v1399 = vmul.f32 %v1396, %v1398
        %v1400 = vadd.f32 %v1396, %v1399
        %vm1401 = vweird.f32 %v1395
        %vm1402 = vweird.f32 %v1396
        %vm1403 = vmor %vm1401, %vm1402
        %v1404 = vsel %vm1403, %v1396, %v1400
        %v1405 = vand.u32 2147483647, %v1395
        %vm1406 = vcmp.eq.f32.partialorder %v1405, 8.507059e+37
        %v1407 = vand.u32 %v1395, 2147483648
        %v1408 = vor.u32 1.1754944e-38, %v1407
        %v1409 = vsel %vm1406, %v1408, %v1404
        %v1410 = vmul.f32 1.0, %v1409
        %v1411 = vtanh.pop %v1344
        %v1412 = vxor.u32 %v1370, 2147483648
        %v1413 = vmul.f32 %v1412, 1.442695
        %v1414 = vpow.pop %v1413
        %v1415 = vadd.f32 %v1414, 1.0
        %v1416 = vrcp.pop %v1415
        %v1417 = vmul.f32 %v1415, %v1416
        %v1418 = vsub.f32 1.0, %v1417
        %v1419 = vmul.f32 %v1416, %v1418
        %v1420 = vadd.f32 %v1416, %v1419
        %vm1421 = vweird.f32 %v1415
        %vm1422 = vweird.f32 %v1416
        %vm1423 = vmor %vm1421, %vm1422
        %v1424 = vsel %vm1423, %v1416, %v1420
        %v1425 = vand.u32 2147483647, %v1415
        %vm1426 = vcmp.eq.f32.partialorder %v1425, 8.507059e+37
        %v1427 = vand.u32 %v1415, 2147483648
        %v1428 = vor.u32 1.1754944e-38, %v1427
        %v1429 = vsel %vm1426, %v1428, %v1424
        %v1430 = vmul.f32 1.0, %v1429
        %v1431 = vld [vmem:[#allocation3] sm:$0xff]
        %v1432 = vmul.f32 %v1410, %v1431
        %v1433 = vmul.f32 %v1391, %v1411
        %v1434 = vadd.f32 %v1432, %v1433
        %v1435 = vtanh.pop %v1434
        %v1436 = vmul.f32 %v1430, %v1435
        %1437 = vst [vmem:[#allocation3] sm:$0xff] %v1434
        %1438 = vst [vmem:[#allocation2] sm:$0xff] %v1436
        %v1439 = vpack.c.bf16 %v1436, %v1436
        %s1440 = scalar_lea.vmem %s292, 4
        %1441 = vst [vmem:[%s1440] sm:$0xf] %v1439
        %s1442 = scalar_lea.vmem %s286, 8
        %v1443 = vld [vmem:[%s1442] sm:$0xf]
        %v1444 = vld [vmem:[#allocation2] sm:$0xff]
        %v1445 = vpack.c.bf16 %v1444, %v1444
        %v1446 = vld [vmem:[#allocation4] sm:$0xff]
        %v1447 = vld [vmem:[#allocation4 + $0x8] sm:$0xff]
        %v1448 = vld [vmem:[#allocation4 + $0x10] sm:$0xff]
        %v1449 = vld [vmem:[#allocation4 + $0x18] sm:$0xff]
        %v1450 = vld [vmem:[#allocation4 + $0x20] sm:$0xff]
        %v1451 = vld [vmem:[#allocation4 + $0x28] sm:$0xff]
        %v1452 = vld [vmem:[#allocation4 + $0x30] sm:$0xff]
        %v1453 = vld [vmem:[#allocation4 + $0x38] sm:$0xff]
        %v1454 = vld [vmem:[#allocation4 + $0x40] sm:$0xff]
        %v1455 = vld [vmem:[#allocation4 + $0x48] sm:$0xff]
        %v1456 = vld [vmem:[#allocation4 + $0x50] sm:$0xff]
        %v1457 = vld [vmem:[#allocation4 + $0x58] sm:$0xff]
        %v1458 = vld [vmem:[#allocation4 + $0x60] sm:$0xff]
        %v1459 = vld [vmem:[#allocation4 + $0x68] sm:$0xff]
        %v1460 = vld [vmem:[#allocation4 + $0x70] sm:$0xff]
        %v1461 = vld [vmem:[#allocation4 + $0x78] sm:$0xff]
        %v1462 = vld [vmem:[#allocation4 + $0x80] sm:$0xff]
        %v1463 = vld [vmem:[#allocation4 + $0x88] sm:$0xff]
        %v1464 = vld [vmem:[#allocation4 + $0x90] sm:$0xff]
        %v1465 = vld [vmem:[#allocation4 + $0x98] sm:$0xff]
        %v1466 = vld [vmem:[#allocation4 + $0xa0] sm:$0xff]
        %v1467 = vld [vmem:[#allocation4 + $0xa8] sm:$0xff]
        %v1468 = vld [vmem:[#allocation4 + $0xb0] sm:$0xff]
        %v1469 = vld [vmem:[#allocation4 + $0xb8] sm:$0xff]
        %v1470 = vld [vmem:[#allocation4 + $0xc0] sm:$0xff]
        %v1471 = vld [vmem:[#allocation4 + $0xc8] sm:$0xff]
        %v1472 = vld [vmem:[#allocation4 + $0xd0] sm:$0xff]
        %v1473 = vld [vmem:[#allocation4 + $0xd8] sm:$0xff]
        %v1474 = vld [vmem:[#allocation4 + $0xe0] sm:$0xff]
        %v1475 = vld [vmem:[#allocation4 + $0xe8] sm:$0xff]
        %v1476 = vld [vmem:[#allocation4 + $0xf0] sm:$0xff]
        %v1477 = vld [vmem:[#allocation4 + $0xf8] sm:$0xff]
        %v1478 = vld [vmem:[#allocation4 + $0x100] sm:$0xff]
        %v1479 = vld [vmem:[#allocation4 + $0x108] sm:$0xff]
        %v1480 = vld [vmem:[#allocation4 + $0x110] sm:$0xff]
        %v1481 = vld [vmem:[#allocation4 + $0x118] sm:$0xff]
        %v1482 = vld [vmem:[#allocation4 + $0x120] sm:$0xff]
        %v1483 = vld [vmem:[#allocation4 + $0x128] sm:$0xff]
        %v1484 = vld [vmem:[#allocation4 + $0x130] sm:$0xff]
        %v1485 = vld [vmem:[#allocation4 + $0x138] sm:$0xff]
        %v1486 = vld [vmem:[#allocation4 + $0x140] sm:$0xff]
        %v1487 = vld [vmem:[#allocation4 + $0x148] sm:$0xff]
        %v1488 = vld [vmem:[#allocation4 + $0x150] sm:$0xff]
        %v1489 = vld [vmem:[#allocation4 + $0x158] sm:$0xff]
        %v1490 = vld [vmem:[#allocation4 + $0x160] sm:$0xff]
        %v1491 = vld [vmem:[#allocation4 + $0x168] sm:$0xff]
        %v1492 = vld [vmem:[#allocation4 + $0x170] sm:$0xff]
        %v1493 = vld [vmem:[#allocation4 + $0x178] sm:$0xff]
        %v1494 = vld [vmem:[#allocation4 + $0x180] sm:$0xff]
        %v1495 = vld [vmem:[#allocation4 + $0x188] sm:$0xff]
        %v1496 = vld [vmem:[#allocation4 + $0x190] sm:$0xff]
        %v1497 = vld [vmem:[#allocation4 + $0x198] sm:$0xff]
        %v1498 = vld [vmem:[#allocation4 + $0x1a0] sm:$0xff]
        %v1499 = vld [vmem:[#allocation4 + $0x1a8] sm:$0xff]
        %v1500 = vld [vmem:[#allocation4 + $0x1b0] sm:$0xff]
        %v1501 = vld [vmem:[#allocation4 + $0x1b8] sm:$0xff]
        %v1502 = vld [vmem:[#allocation4 + $0x1c0] sm:$0xff]
        %v1503 = vld [vmem:[#allocation4 + $0x1c8] sm:$0xff]
        %v1504 = vld [vmem:[#allocation4 + $0x1d0] sm:$0xff]
        %v1505 = vld [vmem:[#allocation4 + $0x1d8] sm:$0xff]
        %v1506 = vld [vmem:[#allocation4 + $0x1e0] sm:$0xff]
        %v1507 = vld [vmem:[#allocation4 + $0x1e8] sm:$0xff]
        %v1508 = vld [vmem:[#allocation4 + $0x1f0] sm:$0xff]
        %v1509 = vld [vmem:[#allocation4 + $0x1f8] sm:$0xff]
        %v1510 = vld [vmem:[%s2] sm:$0xf]
        %v1512 = vperm.slane %v1510, 0
        %v1513 = vperm.slane %v1510, 1
        %v1514 = vperm.slane %v1510, 2
        %v1515 = vperm.slane %v1510, 3
        %v1584 = vunpack.c.l.b16 %v1446
        %v1585 = vunpack.c.h.b16 %v1446
        %v1586 = vunpack.c.l.b16 %v1447
        %v1587 = vunpack.c.h.b16 %v1447
        %v1588 = vunpack.c.l.b16 %v1448
        %v1589 = vunpack.c.h.b16 %v1448
        %v1590 = vunpack.c.l.b16 %v1449
        %v1591 = vunpack.c.h.b16 %v1449
        %v1592 = vunpack.c.l.b16 %v1450
        %v1593 = vunpack.c.h.b16 %v1450
        %v1594 = vunpack.c.l.b16 %v1451
        %v1595 = vunpack.c.h.b16 %v1451
        %v1596 = vunpack.c.l.b16 %v1452
        %v1597 = vunpack.c.h.b16 %v1452
        %v1598 = vunpack.c.l.b16 %v1453
        %v1599 = vunpack.c.h.b16 %v1453
        %v1600 = vunpack.c.l.b16 %v1454
        %v1601 = vunpack.c.h.b16 %v1454
        %v1602 = vunpack.c.l.b16 %v1455
        %v1603 = vunpack.c.h.b16 %v1455
        %v1604 = vunpack.c.l.b16 %v1456
        %v1605 = vunpack.c.h.b16 %v1456
        %v1606 = vunpack.c.l.b16 %v1457
        %v1607 = vunpack.c.h.b16 %v1457
        %v1608 = vunpack.c.l.b16 %v1458
        %v1609 = vunpack.c.h.b16 %v1458
        %v1610 = vunpack.c.l.b16 %v1459
        %v1611 = vunpack.c.h.b16 %v1459
        %v1612 = vunpack.c.l.b16 %v1460
        %v1613 = vunpack.c.h.b16 %v1460
        %v1614 = vunpack.c.l.b16 %v1461
        %v1615 = vunpack.c.h.b16 %v1461
        %v1616 = vunpack.c.l.b16 %v1462
        %v1617 = vunpack.c.h.b16 %v1462
        %v1618 = vunpack.c.l.b16 %v1463
        %v1619 = vunpack.c.h.b16 %v1463
        %v1620 = vunpack.c.l.b16 %v1464
        %v1621 = vunpack.c.h.b16 %v1464
        %v1622 = vunpack.c.l.b16 %v1465
        %v1623 = vunpack.c.h.b16 %v1465
        %v1624 = vunpack.c.l.b16 %v1466
        %v1625 = vunpack.c.h.b16 %v1466
        %v1626 = vunpack.c.l.b16 %v1467
        %v1627 = vunpack.c.h.b16 %v1467
        %v1628 = vunpack.c.l.b16 %v1468
        %v1629 = vunpack.c.h.b16 %v1468
        %v1630 = vunpack.c.l.b16 %v1469
        %v1631 = vunpack.c.h.b16 %v1469
        %v1632 = vunpack.c.l.b16 %v1470
        %v1633 = vunpack.c.h.b16 %v1470
        %v1634 = vunpack.c.l.b16 %v1471
        %v1635 = vunpack.c.h.b16 %v1471
        %v1636 = vunpack.c.l.b16 %v1472
        %v1637 = vunpack.c.h.b16 %v1472
        %v1638 = vunpack.c.l.b16 %v1473
        %v1639 = vunpack.c.h.b16 %v1473
        %v1640 = vunpack.c.l.b16 %v1474
        %v1641 = vunpack.c.h.b16 %v1474
        %v1642 = vunpack.c.l.b16 %v1475
        %v1643 = vunpack.c.h.b16 %v1475
        %v1644 = vunpack.c.l.b16 %v1476
        %v1645 = vunpack.c.h.b16 %v1476
        %v1646 = vunpack.c.l.b16 %v1477
        %v1647 = vunpack.c.h.b16 %v1477
        %v1648 = vunpack.c.l.b16 %v1478
        %v1649 = vunpack.c.h.b16 %v1478
        %v1650 = vunpack.c.l.b16 %v1479
        %v1651 = vunpack.c.h.b16 %v1479
        %v1652 = vunpack.c.l.b16 %v1480
        %v1653 = vunpack.c.h.b16 %v1480
        %v1654 = vunpack.c.l.b16 %v1481
        %v1655 = vunpack.c.h.b16 %v1481
        %v1656 = vunpack.c.l.b16 %v1482
        %v1657 = vunpack.c.h.b16 %v1482
        %v1658 = vunpack.c.l.b16 %v1483
        %v1659 = vunpack.c.h.b16 %v1483
        %v1660 = vunpack.c.l.b16 %v1484
        %v1661 = vunpack.c.h.b16 %v1484
        %v1662 = vunpack.c.l.b16 %v1485
        %v1663 = vunpack.c.h.b16 %v1485
        %v1664 = vunpack.c.l.b16 %v1486
        %v1665 = vunpack.c.h.b16 %v1486
        %v1666 = vunpack.c.l.b16 %v1487
        %v1667 = vunpack.c.h.b16 %v1487
        %v1668 = vunpack.c.l.b16 %v1488
        %v1669 = vunpack.c.h.b16 %v1488
        %v1670 = vunpack.c.l.b16 %v1489
        %v1671 = vunpack.c.h.b16 %v1489
        %v1672 = vunpack.c.l.b16 %v1490
        %v1673 = vunpack.c.h.b16 %v1490
        %v1674 = vunpack.c.l.b16 %v1491
        %v1675 = vunpack.c.h.b16 %v1491
        %v1676 = vunpack.c.l.b16 %v1492
        %v1677 = vunpack.c.h.b16 %v1492
        %v1678 = vunpack.c.l.b16 %v1493
        %v1679 = vunpack.c.h.b16 %v1493
        %v1680 = vunpack.c.l.b16 %v1494
        %v1681 = vunpack.c.h.b16 %v1494
        %v1682 = vunpack.c.l.b16 %v1495
        %v1683 = vunpack.c.h.b16 %v1495
        %v1684 = vunpack.c.l.b16 %v1496
        %v1685 = vunpack.c.h.b16 %v1496
        %v1686 = vunpack.c.l.b16 %v1497
        %v1687 = vunpack.c.h.b16 %v1497
        %v1688 = vunpack.c.l.b16 %v1498
        %v1689 = vunpack.c.h.b16 %v1498
        %v1690 = vunpack.c.l.b16 %v1499
        %v1691 = vunpack.c.h.b16 %v1499
        %v1692 = vunpack.c.l.b16 %v1500
        %v1693 = vunpack.c.h.b16 %v1500
        %v1694 = vunpack.c.l.b16 %v1501
        %v1695 = vunpack.c.h.b16 %v1501
        %v1696 = vunpack.c.l.b16 %v1502
        %v1697 = vunpack.c.h.b16 %v1502
        %v1698 = vunpack.c.l.b16 %v1503
        %v1699 = vunpack.c.h.b16 %v1503
        %v1700 = vunpack.c.l.b16 %v1504
        %v1701 = vunpack.c.h.b16 %v1504
        %v1702 = vunpack.c.l.b16 %v1505
        %v1703 = vunpack.c.h.b16 %v1505
        %v1704 = vunpack.c.l.b16 %v1506
        %v1705 = vunpack.c.h.b16 %v1506
        %v1706 = vunpack.c.l.b16 %v1507
        %v1707 = vunpack.c.h.b16 %v1507
        %v1708 = vunpack.c.l.b16 %v1508
        %v1709 = vunpack.c.h.b16 %v1508
        %v1710 = vunpack.c.l.b16 %v1509
        %v1711 = vunpack.c.h.b16 %v1509
        %v1712 = vpack.c.b16 %v1588, %v1584
        %v1713 = vpack.c.b16 %v1589, %v1585
        %v1714 = vpack.c.b16 %v1590, %v1586
        %v1715 = vpack.c.b16 %v1591, %v1587
        %v1716 = vpack.c.b16 %v1596, %v1592
        %v1717 = vpack.c.b16 %v1597, %v1593
        %v1718 = vpack.c.b16 %v1598, %v1594
        %v1719 = vpack.c.b16 %v1599, %v1595
        %v1720 = vpack.c.b16 %v1604, %v1600
        %v1721 = vpack.c.b16 %v1605, %v1601
        %v1722 = vpack.c.b16 %v1606, %v1602
        %v1723 = vpack.c.b16 %v1607, %v1603
        %v1724 = vpack.c.b16 %v1612, %v1608
        %v1725 = vpack.c.b16 %v1613, %v1609
        %v1726 = vpack.c.b16 %v1614, %v1610
        %v1727 = vpack.c.b16 %v1615, %v1611
        %v1728 = vpack.c.b16 %v1620, %v1616
        %v1729 = vpack.c.b16 %v1621, %v1617
        %v1730 = vpack.c.b16 %v1622, %v1618
        %v1731 = vpack.c.b16 %v1623, %v1619
        %v1732 = vpack.c.b16 %v1628, %v1624
        %v1733 = vpack.c.b16 %v1629, %v1625
        %v1734 = vpack.c.b16 %v1630, %v1626
        %v1735 = vpack.c.b16 %v1631, %v1627
        %v1736 = vpack.c.b16 %v1636, %v1632
        %v1737 = vpack.c.b16 %v1637, %v1633
        %v1738 = vpack.c.b16 %v1638, %v1634
        %v1739 = vpack.c.b16 %v1639, %v1635
        %v1740 = vpack.c.b16 %v1644, %v1640
        %v1741 = vpack.c.b16 %v1645, %v1641
        %v1742 = vpack.c.b16 %v1646, %v1642
        %v1743 = vpack.c.b16 %v1647, %v1643
        %v1744 = vpack.c.b16 %v1652, %v1648
        %v1745 = vpack.c.b16 %v1653, %v1649
        %v1746 = vpack.c.b16 %v1654, %v1650
        %v1747 = vpack.c.b16 %v1655, %v1651
        %v1748 = vpack.c.b16 %v1660, %v1656
        %v1749 = vpack.c.b16 %v1661, %v1657
        %v1750 = vpack.c.b16 %v1662, %v1658
        %v1751 = vpack.c.b16 %v1663, %v1659
        %v1752 = vpack.c.b16 %v1668, %v1664
        %v1753 = vpack.c.b16 %v1669, %v1665
        %v1754 = vpack.c.b16 %v1670, %v1666
        %v1755 = vpack.c.b16 %v1671, %v1667
        %v1756 = vpack.c.b16 %v1676, %v1672
        %v1757 = vpack.c.b16 %v1677, %v1673
        %v1758 = vpack.c.b16 %v1678, %v1674
        %v1759 = vpack.c.b16 %v1679, %v1675
        %v1760 = vpack.c.b16 %v1684, %v1680
        %v1761 = vpack.c.b16 %v1685, %v1681
        %v1762 = vpack.c.b16 %v1686, %v1682
        %v1763 = vpack.c.b16 %v1687, %v1683
        %v1764 = vpack.c.b16 %v1692, %v1688
        %v1765 = vpack.c.b16 %v1693, %v1689
        %v1766 = vpack.c.b16 %v1694, %v1690
        %v1767 = vpack.c.b16 %v1695, %v1691
        %v1768 = vpack.c.b16 %v1700, %v1696
        %v1769 = vpack.c.b16 %v1701, %v1697
        %v1770 = vpack.c.b16 %v1702, %v1698
        %v1771 = vpack.c.b16 %v1703, %v1699
        %v1772 = vpack.c.b16 %v1708, %v1704
        %v1773 = vpack.c.b16 %v1709, %v1705
        %v1774 = vpack.c.b16 %v1710, %v1706
        %v1775 = vpack.c.b16 %v1711, %v1707
        %1840 = vmatpush.bf16.msra.mxu0 %v1740
        %1841 = vmatpush.bf16.msra.mxu0 %v1736
        %1842 = vmatpush.bf16.msra.mxu0 %v1732
        %1843 = vmatpush.bf16.msra.mxu0 %v1728
        %1844 = vmatpush.bf16.msra.mxu0 %v1724
        %1845 = vmatpush.bf16.msra.mxu0 %v1720
        %1846 = vmatpush.bf16.msra.mxu0 %v1716
        %1847 = vmatpush.bf16.msra.mxu0 %v1712
        %1848 = vmatmul.bf16.gmra.mxu0 %v1443
        %v1849 = vpop.f32.mrf.mxu0
        %v1850 = vadd.f32 %v1512, %v1849
        %v1851 = vpop.f32.mrf.mxu0
        %1852 = vdwg.mxu0
        %1853 = vmatpush.bf16.msra.mxu0 %v1772
        %1854 = vmatpush.bf16.msra.mxu0 %v1768
        %1855 = vmatpush.bf16.msra.mxu0 %v1764
        %1856 = vmatpush.bf16.msra.mxu0 %v1760
        %1857 = vmatpush.bf16.msra.mxu0 %v1756
        %1858 = vmatpush.bf16.msra.mxu0 %v1752
        %1859 = vmatpush.bf16.msra.mxu0 %v1748
        %1860 = vmatpush.bf16.msra.mxu0 %v1744
        %1861 = vmatmul.bf16.gmra.mxu0 %v1445
        %v1862 = vpop.f32.mrf.mxu0
        %v1863 = vadd.f32 %v1850, %v1862
        %v1864 = vpop.f32.mrf.mxu0
        %1865 = vdwg.mxu0
        %1866 = vmatpush.bf16.msra.mxu0 %v1741
        %1867 = vmatpush.bf16.msra.mxu0 %v1737
        %1868 = vmatpush.bf16.msra.mxu0 %v1733
        %1869 = vmatpush.bf16.msra.mxu0 %v1729
        %1870 = vmatpush.bf16.msra.mxu0 %v1725
        %1871 = vmatpush.bf16.msra.mxu0 %v1721
        %1872 = vmatpush.bf16.msra.mxu0 %v1717
        %1873 = vmatpush.bf16.msra.mxu0 %v1713
        %1874 = vmatmul.bf16.gmra.mxu0 %v1443
        %v1875 = vpop.f32.mrf.mxu0
        %v1876 = vadd.f32 %v1513, %v1875
        %v1877 = vpop.f32.mrf.mxu0
        %1878 = vdwg.mxu0
        %1879 = vmatpush.bf16.msra.mxu0 %v1773
        %1880 = vmatpush.bf16.msra.mxu0 %v1769
        %1881 = vmatpush.bf16.msra.mxu0 %v1765
        %1882 = vmatpush.bf16.msra.mxu0 %v1761
        %1883 = vmatpush.bf16.msra.mxu0 %v1757
        %1884 = vmatpush.bf16.msra.mxu0 %v1753
        %1885 = vmatpush.bf16.msra.mxu0 %v1749
        %1886 = vmatpush.bf16.msra.mxu0 %v1745
        %1887 = vmatmul.bf16.gmra.mxu0 %v1445
        %v1888 = vpop.f32.mrf.mxu0
        %v1889 = vadd.f32 %v1876, %v1888
        %v1890 = vpop.f32.mrf.mxu0
        %1891 = vdwg.mxu0
        %1892 = vmatpush.bf16.msra.mxu0 %v1742
        %1893 = vmatpush.bf16.msra.mxu0 %v1738
        %1894 = vmatpush.bf16.msra.mxu0 %v1734
        %1895 = vmatpush.bf16.msra.mxu0 %v1730
        %1896 = vmatpush.bf16.msra.mxu0 %v1726
        %1897 = vmatpush.bf16.msra.mxu0 %v1722
        %1898 = vmatpush.bf16.msra.mxu0 %v1718
        %1899 = vmatpush.bf16.msra.mxu0 %v1714
        %1900 = vmatmul.bf16.gmra.mxu0 %v1443
        %v1901 = vpop.f32.mrf.mxu0
        %v1902 = vadd.f32 %v1514, %v1901
        %v1903 = vpop.f32.mrf.mxu0
        %1904 = vdwg.mxu0
        %1905 = vmatpush.bf16.msra.mxu0 %v1774
        %1906 = vmatpush.bf16.msra.mxu0 %v1770
        %1907 = vmatpush.bf16.msra.mxu0 %v1766
        %1908 = vmatpush.bf16.msra.mxu0 %v1762
        %1909 = vmatpush.bf16.msra.mxu0 %v1758
        %1910 = vmatpush.bf16.msra.mxu0 %v1754
        %1911 = vmatpush.bf16.msra.mxu0 %v1750
        %1912 = vmatpush.bf16.msra.mxu0 %v1746
        %1913 = vmatmul.bf16.gmra.mxu0 %v1445
        %v1914 = vpop.f32.mrf.mxu0
        %v1915 = vadd.f32 %v1902, %v1914
        %v1916 = vpop.f32.mrf.mxu0
        %1917 = vdwg.mxu0
        %1918 = vmatpush.bf16.msra.mxu0 %v1743
        %1919 = vmatpush.bf16.msra.mxu0 %v1739
        %1920 = vmatpush.bf16.msra.mxu0 %v1735
        %1921 = vmatpush.bf16.msra.mxu0 %v1731
        %1922 = vmatpush.bf16.msra.mxu0 %v1727
        %1923 = vmatpush.bf16.msra.mxu0 %v1723
        %1924 = vmatpush.bf16.msra.mxu0 %v1719
        %1925 = vmatpush.bf16.msra.mxu0 %v1715
        %1926 = vmatmul.bf16.gmra.mxu0 %v1443
        %v1927 = vpop.f32.mrf.mxu0
        %v1928 = vadd.f32 %v1515, %v1927
        %v1929 = vpop.f32.mrf.mxu0
        %1930 = vdwg.mxu0
        %1931 = vmatpush.bf16.msra.mxu0 %v1775
        %1932 = vmatpush.bf16.msra.mxu0 %v1771
        %1933 = vmatpush.bf16.msra.mxu0 %v1767
        %1934 = vmatpush.bf16.msra.mxu0 %v1763
        %1935 = vmatpush.bf16.msra.mxu0 %v1759
        %1936 = vmatpush.bf16.msra.mxu0 %v1755
        %1937 = vmatpush.bf16.msra.mxu0 %v1751
        %1938 = vmatpush.bf16.msra.mxu0 %v1747
        %1939 = vmatmul.bf16.gmra.mxu0 %v1445
        %v1940 = vpop.f32.mrf.mxu0
        %v1941 = vadd.f32 %v1928, %v1940
        %v1942 = vpop.f32.mrf.mxu0
        %1943 = vdwg.mxu0
        %v1944 = vxor.u32 %v1863, 2147483648
        %v1945 = vmul.f32 %v1944, 1.442695
        %v1946 = vpow.pop %v1945
        %v1947 = vadd.f32 %v1946, 1.0
        %v1948 = vrcp.pop %v1947
        %v1949 = vmul.f32 %v1947, %v1948
        %v1950 = vsub.f32 1.0, %v1949
        %v1951 = vmul.f32 %v1948, %v1950
        %v1952 = vadd.f32 %v1948, %v1951
        %vm1953 = vweird.f32 %v1947
        %vm1954 = vweird.f32 %v1948
        %vm1955 = vmor %vm1953, %vm1954
        %v1956 = vsel %vm1955, %v1948, %v1952
        %v1957 = vand.u32 2147483647, %v1947
        %vm1958 = vcmp.eq.f32.partialorder %v1957, 8.507059e+37
        %v1959 = vand.u32 %v1947, 2147483648
        %v1960 = vor.u32 1.1754944e-38, %v1959
        %v1961 = vsel %vm1958, %v1960, %v1956
        %v1962 = vmul.f32 1.0, %v1961
        %v1963 = vxor.u32 %v1889, 2147483648
        %v1964 = vmul.f32 %v1963, 1.442695
        %v1965 = vpow.pop %v1964
        %v1966 = vadd.f32 %v1965, 1.0
        %v1967 = vrcp.pop %v1966
        %v1968 = vmul.f32 %v1966, %v1967
        %v1969 = vsub.f32 1.0, %v1968
        %v1970 = vmul.f32 %v1967, %v1969
        %v1971 = vadd.f32 %v1967, %v1970
        %vm1972 = vweird.f32 %v1966
        %vm1973 = vweird.f32 %v1967
        %vm1974 = vmor %vm1972, %vm1973
        %v1975 = vsel %vm1974, %v1967, %v1971
        %v1976 = vand.u32 2147483647, %v1966
        %vm1977 = vcmp.eq.f32.partialorder %v1976, 8.507059e+37
        %v1978 = vand.u32 %v1966, 2147483648
        %v1979 = vor.u32 1.1754944e-38, %v1978
        %v1980 = vsel %vm1977, %v1979, %v1975
        %v1981 = vmul.f32 1.0, %v1980
        %v1982 = vtanh.pop %v1915
        %v1983 = vxor.u32 %v1941, 2147483648
        %v1984 = vmul.f32 %v1983, 1.442695
        %v1985 = vpow.pop %v1984
        %v1986 = vadd.f32 %v1985, 1.0
        %v1987 = vrcp.pop %v1986
        %v1988 = vmul.f32 %v1986, %v1987
        %v1989 = vsub.f32 1.0, %v1988
        %v1990 = vmul.f32 %v1987, %v1989
        %v1991 = vadd.f32 %v1987, %v1990
        %vm1992 = vweird.f32 %v1986
        %vm1993 = vweird.f32 %v1987
        %vm1994 = vmor %vm1992, %vm1993
        %v1995 = vsel %vm1994, %v1987, %v1991
        %v1996 = vand.u32 2147483647, %v1986
        %vm1997 = vcmp.eq.f32.partialorder %v1996, 8.507059e+37
        %v1998 = vand.u32 %v1986, 2147483648
        %v1999 = vor.u32 1.1754944e-38, %v1998
        %v2000 = vsel %vm1997, %v1999, %v1995
        %v2001 = vmul.f32 1.0, %v2000
        %v2002 = vld [vmem:[#allocation3] sm:$0xff]
        %v2003 = vmul.f32 %v1981, %v2002
        %v2004 = vmul.f32 %v1962, %v1982
        %v2005 = vadd.f32 %v2003, %v2004
        %v2006 = vtanh.pop %v2005
        %v2007 = vmul.f32 %v2001, %v2006
        %2008 = vst [vmem:[#allocation3] sm:$0xff] %v2005
        %2009 = vst [vmem:[#allocation2] sm:$0xff] %v2007
        %v2010 = vpack.c.bf16 %v2007, %v2007
        %s2011 = scalar_lea.vmem %s292, 8
        %2012 = vst [vmem:[%s2011] sm:$0xf] %v2010
        %s2013 = scalar_lea.vmem %s286, 12
        %v2014 = vld [vmem:[%s2013] sm:$0xf]
        %v2015 = vld [vmem:[#allocation2] sm:$0xff]
        %v2016 = vpack.c.bf16 %v2015, %v2015
        %v2017 = vld [vmem:[#allocation4] sm:$0xff]
        %v2018 = vld [vmem:[#allocation4 + $0x8] sm:$0xff]
        %v2019 = vld [vmem:[#allocation4 + $0x10] sm:$0xff]
        %v2020 = vld [vmem:[#allocation4 + $0x18] sm:$0xff]
        %v2021 = vld [vmem:[#allocation4 + $0x20] sm:$0xff]
        %v2022 = vld [vmem:[#allocation4 + $0x28] sm:$0xff]
        %v2023 = vld [vmem:[#allocation4 + $0x30] sm:$0xff]
        %v2024 = vld [vmem:[#allocation4 + $0x38] sm:$0xff]
        %v2025 = vld [vmem:[#allocation4 + $0x40] sm:$0xff]
        %v2026 = vld [vmem:[#allocation4 + $0x48] sm:$0xff]
        %v2027 = vld [vmem:[#allocation4 + $0x50] sm:$0xff]
        %v2028 = vld [vmem:[#allocation4 + $0x58] sm:$0xff]
        %v2029 = vld [vmem:[#allocation4 + $0x60] sm:$0xff]
        %v2030 = vld [vmem:[#allocation4 + $0x68] sm:$0xff]
        %v2031 = vld [vmem:[#allocation4 + $0x70] sm:$0xff]
        %v2032 = vld [vmem:[#allocation4 + $0x78] sm:$0xff]
        %v2033 = vld [vmem:[#allocation4 + $0x80] sm:$0xff]
        %v2034 = vld [vmem:[#allocation4 + $0x88] sm:$0xff]
        %v2035 = vld [vmem:[#allocation4 + $0x90] sm:$0xff]
        %v2036 = vld [vmem:[#allocation4 + $0x98] sm:$0xff]
        %v2037 = vld [vmem:[#allocation4 + $0xa0] sm:$0xff]
        %v2038 = vld [vmem:[#allocation4 + $0xa8] sm:$0xff]
        %v2039 = vld [vmem:[#allocation4 + $0xb0] sm:$0xff]
        %v2040 = vld [vmem:[#allocation4 + $0xb8] sm:$0xff]
        %v2041 = vld [vmem:[#allocation4 + $0xc0] sm:$0xff]
        %v2042 = vld [vmem:[#allocation4 + $0xc8] sm:$0xff]
        %v2043 = vld [vmem:[#allocation4 + $0xd0] sm:$0xff]
        %v2044 = vld [vmem:[#allocation4 + $0xd8] sm:$0xff]
        %v2045 = vld [vmem:[#allocation4 + $0xe0] sm:$0xff]
        %v2046 = vld [vmem:[#allocation4 + $0xe8] sm:$0xff]
        %v2047 = vld [vmem:[#allocation4 + $0xf0] sm:$0xff]
        %v2048 = vld [vmem:[#allocation4 + $0xf8] sm:$0xff]
        %v2049 = vld [vmem:[#allocation4 + $0x100] sm:$0xff]
        %v2050 = vld [vmem:[#allocation4 + $0x108] sm:$0xff]
        %v2051 = vld [vmem:[#allocation4 + $0x110] sm:$0xff]
        %v2052 = vld [vmem:[#allocation4 + $0x118] sm:$0xff]
        %v2053 = vld [vmem:[#allocation4 + $0x120] sm:$0xff]
        %v2054 = vld [vmem:[#allocation4 + $0x128] sm:$0xff]
        %v2055 = vld [vmem:[#allocation4 + $0x130] sm:$0xff]
        %v2056 = vld [vmem:[#allocation4 + $0x138] sm:$0xff]
        %v2057 = vld [vmem:[#allocation4 + $0x140] sm:$0xff]
        %v2058 = vld [vmem:[#allocation4 + $0x148] sm:$0xff]
        %v2059 = vld [vmem:[#allocation4 + $0x150] sm:$0xff]
        %v2060 = vld [vmem:[#allocation4 + $0x158] sm:$0xff]
        %v2061 = vld [vmem:[#allocation4 + $0x160] sm:$0xff]
        %v2062 = vld [vmem:[#allocation4 + $0x168] sm:$0xff]
        %v2063 = vld [vmem:[#allocation4 + $0x170] sm:$0xff]
        %v2064 = vld [vmem:[#allocation4 + $0x178] sm:$0xff]
        %v2065 = vld [vmem:[#allocation4 + $0x180] sm:$0xff]
        %v2066 = vld [vmem:[#allocation4 + $0x188] sm:$0xff]
        %v2067 = vld [vmem:[#allocation4 + $0x190] sm:$0xff]
        %v2068 = vld [vmem:[#allocation4 + $0x198] sm:$0xff]
        %v2069 = vld [vmem:[#allocation4 + $0x1a0] sm:$0xff]
        %v2070 = vld [vmem:[#allocation4 + $0x1a8] sm:$0xff]
        %v2071 = vld [vmem:[#allocation4 + $0x1b0] sm:$0xff]
        %v2072 = vld [vmem:[#allocation4 + $0x1b8] sm:$0xff]
        %v2073 = vld [vmem:[#allocation4 + $0x1c0] sm:$0xff]
        %v2074 = vld [vmem:[#allocation4 + $0x1c8] sm:$0xff]
        %v2075 = vld [vmem:[#allocation4 + $0x1d0] sm:$0xff]
        %v2076 = vld [vmem:[#allocation4 + $0x1d8] sm:$0xff]
        %v2077 = vld [vmem:[#allocation4 + $0x1e0] sm:$0xff]
        %v2078 = vld [vmem:[#allocation4 + $0x1e8] sm:$0xff]
        %v2079 = vld [vmem:[#allocation4 + $0x1f0] sm:$0xff]
        %v2080 = vld [vmem:[#allocation4 + $0x1f8] sm:$0xff]
        %v2081 = vld [vmem:[%s2] sm:$0xf]
        %v2083 = vperm.slane %v2081, 0
        %v2084 = vperm.slane %v2081, 1
        %v2085 = vperm.slane %v2081, 2
        %v2086 = vperm.slane %v2081, 3
        %v2155 = vunpack.c.l.b16 %v2017
        %v2156 = vunpack.c.h.b16 %v2017
        %v2157 = vunpack.c.l.b16 %v2018
        %v2158 = vunpack.c.h.b16 %v2018
        %v2159 = vunpack.c.l.b16 %v2019
        %v2160 = vunpack.c.h.b16 %v2019
        %v2161 = vunpack.c.l.b16 %v2020
        %v2162 = vunpack.c.h.b16 %v2020
        %v2163 = vunpack.c.l.b16 %v2021
        %v2164 = vunpack.c.h.b16 %v2021
        %v2165 = vunpack.c.l.b16 %v2022
        %v2166 = vunpack.c.h.b16 %v2022
        %v2167 = vunpack.c.l.b16 %v2023
        %v2168 = vunpack.c.h.b16 %v2023
        %v2169 = vunpack.c.l.b16 %v2024
        %v2170 = vunpack.c.h.b16 %v2024
        %v2171 = vunpack.c.l.b16 %v2025
        %v2172 = vunpack.c.h.b16 %v2025
        %v2173 = vunpack.c.l.b16 %v2026
        %v2174 = vunpack.c.h.b16 %v2026
        %v2175 = vunpack.c.l.b16 %v2027
        %v2176 = vunpack.c.h.b16 %v2027
        %v2177 = vunpack.c.l.b16 %v2028
        %v2178 = vunpack.c.h.b16 %v2028
        %v2179 = vunpack.c.l.b16 %v2029
        %v2180 = vunpack.c.h.b16 %v2029
        %v2181 = vunpack.c.l.b16 %v2030
        %v2182 = vunpack.c.h.b16 %v2030
        %v2183 = vunpack.c.l.b16 %v2031
        %v2184 = vunpack.c.h.b16 %v2031
        %v2185 = vunpack.c.l.b16 %v2032
        %v2186 = vunpack.c.h.b16 %v2032
        %v2187 = vunpack.c.l.b16 %v2033
        %v2188 = vunpack.c.h.b16 %v2033
        %v2189 = vunpack.c.l.b16 %v2034
        %v2190 = vunpack.c.h.b16 %v2034
        %v2191 = vunpack.c.l.b16 %v2035
        %v2192 = vunpack.c.h.b16 %v2035
        %v2193 = vunpack.c.l.b16 %v2036
        %v2194 = vunpack.c.h.b16 %v2036
        %v2195 = vunpack.c.l.b16 %v2037
        %v2196 = vunpack.c.h.b16 %v2037
        %v2197 = vunpack.c.l.b16 %v2038
        %v2198 = vunpack.c.h.b16 %v2038
        %v2199 = vunpack.c.l.b16 %v2039
        %v2200 = vunpack.c.h.b16 %v2039
        %v2201 = vunpack.c.l.b16 %v2040
        %v2202 = vunpack.c.h.b16 %v2040
        %v2203 = vunpack.c.l.b16 %v2041
        %v2204 = vunpack.c.h.b16 %v2041
        %v2205 = vunpack.c.l.b16 %v2042
        %v2206 = vunpack.c.h.b16 %v2042
        %v2207 = vunpack.c.l.b16 %v2043
        %v2208 = vunpack.c.h.b16 %v2043
        %v2209 = vunpack.c.l.b16 %v2044
        %v2210 = vunpack.c.h.b16 %v2044
        %v2211 = vunpack.c.l.b16 %v2045
        %v2212 = vunpack.c.h.b16 %v2045
        %v2213 = vunpack.c.l.b16 %v2046
        %v2214 = vunpack.c.h.b16 %v2046
        %v2215 = vunpack.c.l.b16 %v2047
        %v2216 = vunpack.c.h.b16 %v2047
        %v2217 = vunpack.c.l.b16 %v2048
        %v2218 = vunpack.c.h.b16 %v2048
        %v2219 = vunpack.c.l.b16 %v2049
        %v2220 = vunpack.c.h.b16 %v2049
        %v2221 = vunpack.c.l.b16 %v2050
        %v2222 = vunpack.c.h.b16 %v2050
        %v2223 = vunpack.c.l.b16 %v2051
        %v2224 = vunpack.c.h.b16 %v2051
        %v2225 = vunpack.c.l.b16 %v2052
        %v2226 = vunpack.c.h.b16 %v2052
        %v2227 = vunpack.c.l.b16 %v2053
        %v2228 = vunpack.c.h.b16 %v2053
        %v2229 = vunpack.c.l.b16 %v2054
        %v2230 = vunpack.c.h.b16 %v2054
        %v2231 = vunpack.c.l.b16 %v2055
        %v2232 = vunpack.c.h.b16 %v2055
        %v2233 = vunpack.c.l.b16 %v2056
        %v2234 = vunpack.c.h.b16 %v2056
        %v2235 = vunpack.c.l.b16 %v2057
        %v2236 = vunpack.c.h.b16 %v2057
        %v2237 = vunpack.c.l.b16 %v2058
        %v2238 = vunpack.c.h.b16 %v2058
        %v2239 = vunpack.c.l.b16 %v2059
        %v2240 = vunpack.c.h.b16 %v2059
        %v2241 = vunpack.c.l.b16 %v2060
        %v2242 = vunpack.c.h.b16 %v2060
        %v2243 = vunpack.c.l.b16 %v2061
        %v2244 = vunpack.c.h.b16 %v2061
        %v2245 = vunpack.c.l.b16 %v2062
        %v2246 = vunpack.c.h.b16 %v2062
        %v2247 = vunpack.c.l.b16 %v2063
        %v2248 = vunpack.c.h.b16 %v2063
        %v2249 = vunpack.c.l.b16 %v2064
        %v2250 = vunpack.c.h.b16 %v2064
        %v2251 = vunpack.c.l.b16 %v2065
        %v2252 = vunpack.c.h.b16 %v2065
        %v2253 = vunpack.c.l.b16 %v2066
        %v2254 = vunpack.c.h.b16 %v2066
        %v2255 = vunpack.c.l.b16 %v2067
        %v2256 = vunpack.c.h.b16 %v2067
        %v2257 = vunpack.c.l.b16 %v2068
        %v2258 = vunpack.c.h.b16 %v2068
        %v2259 = vunpack.c.l.b16 %v2069
        %v2260 = vunpack.c.h.b16 %v2069
        %v2261 = vunpack.c.l.b16 %v2070
        %v2262 = vunpack.c.h.b16 %v2070
        %v2263 = vunpack.c.l.b16 %v2071
        %v2264 = vunpack.c.h.b16 %v2071
        %v2265 = vunpack.c.l.b16 %v2072
        %v2266 = vunpack.c.h.b16 %v2072
        %v2267 = vunpack.c.l.b16 %v2073
        %v2268 = vunpack.c.h.b16 %v2073
        %v2269 = vunpack.c.l.b16 %v2074
        %v2270 = vunpack.c.h.b16 %v2074
        %v2271 = vunpack.c.l.b16 %v2075
        %v2272 = vunpack.c.h.b16 %v2075
        %v2273 = vunpack.c.l.b16 %v2076
        %v2274 = vunpack.c.h.b16 %v2076
        %v2275 = vunpack.c.l.b16 %v2077
        %v2276 = vunpack.c.h.b16 %v2077
        %v2277 = vunpack.c.l.b16 %v2078
        %v2278 = vunpack.c.h.b16 %v2078
        %v2279 = vunpack.c.l.b16 %v2079
        %v2280 = vunpack.c.h.b16 %v2079
        %v2281 = vunpack.c.l.b16 %v2080
        %v2282 = vunpack.c.h.b16 %v2080
        %v2283 = vpack.c.b16 %v2159, %v2155
        %v2284 = vpack.c.b16 %v2160, %v2156
        %v2285 = vpack.c.b16 %v2161, %v2157
        %v2286 = vpack.c.b16 %v2162, %v2158
        %v2287 = vpack.c.b16 %v2167, %v2163
        %v2288 = vpack.c.b16 %v2168, %v2164
        %v2289 = vpack.c.b16 %v2169, %v2165
        %v2290 = vpack.c.b16 %v2170, %v2166
        %v2291 = vpack.c.b16 %v2175, %v2171
        %v2292 = vpack.c.b16 %v2176, %v2172
        %v2293 = vpack.c.b16 %v2177, %v2173
        %v2294 = vpack.c.b16 %v2178, %v2174
        %v2295 = vpack.c.b16 %v2183, %v2179
        %v2296 = vpack.c.b16 %v2184, %v2180
        %v2297 = vpack.c.b16 %v2185, %v2181
        %v2298 = vpack.c.b16 %v2186, %v2182
        %v2299 = vpack.c.b16 %v2191, %v2187
        %v2300 = vpack.c.b16 %v2192, %v2188
        %v2301 = vpack.c.b16 %v2193, %v2189
        %v2302 = vpack.c.b16 %v2194, %v2190
        %v2303 = vpack.c.b16 %v2199, %v2195
        %v2304 = vpack.c.b16 %v2200, %v2196
        %v2305 = vpack.c.b16 %v2201, %v2197
        %v2306 = vpack.c.b16 %v2202, %v2198
        %v2307 = vpack.c.b16 %v2207, %v2203
        %v2308 = vpack.c.b16 %v2208, %v2204
        %v2309 = vpack.c.b16 %v2209, %v2205
        %v2310 = vpack.c.b16 %v2210, %v2206
        %v2311 = vpack.c.b16 %v2215, %v2211
        %v2312 = vpack.c.b16 %v2216, %v2212
        %v2313 = vpack.c.b16 %v2217, %v2213
        %v2314 = vpack.c.b16 %v2218, %v2214
        %v2315 = vpack.c.b16 %v2223, %v2219
        %v2316 = vpack.c.b16 %v2224, %v2220
        %v2317 = vpack.c.b16 %v2225, %v2221
        %v2318 = vpack.c.b16 %v2226, %v2222
        %v2319 = vpack.c.b16 %v2231, %v2227
        %v2320 = vpack.c.b16 %v2232, %v2228
        %v2321 = vpack.c.b16 %v2233, %v2229
        %v2322 = vpack.c.b16 %v2234, %v2230
        %v2323 = vpack.c.b16 %v2239, %v2235
        %v2324 = vpack.c.b16 %v2240, %v2236
        %v2325 = vpack.c.b16 %v2241, %v2237
        %v2326 = vpack.c.b16 %v2242, %v2238
        %v2327 = vpack.c.b16 %v2247, %v2243
        %v2328 = vpack.c.b16 %v2248, %v2244
        %v2329 = vpack.c.b16 %v2249, %v2245
        %v2330 = vpack.c.b16 %v2250, %v2246
        %v2331 = vpack.c.b16 %v2255, %v2251
        %v2332 = vpack.c.b16 %v2256, %v2252
        %v2333 = vpack.c.b16 %v2257, %v2253
        %v2334 = vpack.c.b16 %v2258, %v2254
        %v2335 = vpack.c.b16 %v2263, %v2259
        %v2336 = vpack.c.b16 %v2264, %v2260
        %v2337 = vpack.c.b16 %v2265, %v2261
        %v2338 = vpack.c.b16 %v2266, %v2262
        %v2339 = vpack.c.b16 %v2271, %v2267
        %v2340 = vpack.c.b16 %v2272, %v2268
        %v2341 = vpack.c.b16 %v2273, %v2269
        %v2342 = vpack.c.b16 %v2274, %v2270
        %v2343 = vpack.c.b16 %v2279, %v2275
        %v2344 = vpack.c.b16 %v2280, %v2276
        %v2345 = vpack.c.b16 %v2281, %v2277
        %v2346 = vpack.c.b16 %v2282, %v2278
        %2411 = vmatpush.bf16.msra.mxu0 %v2311
        %2412 = vmatpush.bf16.msra.mxu0 %v2307
        %2413 = vmatpush.bf16.msra.mxu0 %v2303
        %2414 = vmatpush.bf16.msra.mxu0 %v2299
        %2415 = vmatpush.bf16.msra.mxu0 %v2295
        %2416 = vmatpush.bf16.msra.mxu0 %v2291
        %2417 = vmatpush.bf16.msra.mxu0 %v2287
        %2418 = vmatpush.bf16.msra.mxu0 %v2283
        %2419 = vmatmul.bf16.gmra.mxu0 %v2014
        %v2420 = vpop.f32.mrf.mxu0
        %v2421 = vadd.f32 %v2083, %v2420
        %v2422 = vpop.f32.mrf.mxu0
        %2423 = vdwg.mxu0
        %2424 = vmatpush.bf16.msra.mxu0 %v2343
        %2425 = vmatpush.bf16.msra.mxu0 %v2339
        %2426 = vmatpush.bf16.msra.mxu0 %v2335
        %2427 = vmatpush.bf16.msra.mxu0 %v2331
        %2428 = vmatpush.bf16.msra.mxu0 %v2327
        %2429 = vmatpush.bf16.msra.mxu0 %v2323
        %2430 = vmatpush.bf16.msra.mxu0 %v2319
        %2431 = vmatpush.bf16.msra.mxu0 %v2315
        %2432 = vmatmul.bf16.gmra.mxu0 %v2016
        %v2433 = vpop.f32.mrf.mxu0
        %v2434 = vadd.f32 %v2421, %v2433
        %v2435 = vpop.f32.mrf.mxu0
        %2436 = vdwg.mxu0
        %2437 = vmatpush.bf16.msra.mxu0 %v2312
        %2438 = vmatpush.bf16.msra.mxu0 %v2308
        %2439 = vmatpush.bf16.msra.mxu0 %v2304
        %2440 = vmatpush.bf16.msra.mxu0 %v2300
        %2441 = vmatpush.bf16.msra.mxu0 %v2296
        %2442 = vmatpush.bf16.msra.mxu0 %v2292
        %2443 = vmatpush.bf16.msra.mxu0 %v2288
        %2444 = vmatpush.bf16.msra.mxu0 %v2284
        %2445 = vmatmul.bf16.gmra.mxu0 %v2014
        %v2446 = vpop.f32.mrf.mxu0
        %v2447 = vadd.f32 %v2084, %v2446
        %v2448 = vpop.f32.mrf.mxu0
        %2449 = vdwg.mxu0
        %2450 = vmatpush.bf16.msra.mxu0 %v2344
        %2451 = vmatpush.bf16.msra.mxu0 %v2340
        %2452 = vmatpush.bf16.msra.mxu0 %v2336
        %2453 = vmatpush.bf16.msra.mxu0 %v2332
        %2454 = vmatpush.bf16.msra.mxu0 %v2328
        %2455 = vmatpush.bf16.msra.mxu0 %v2324
        %2456 = vmatpush.bf16.msra.mxu0 %v2320
        %2457 = vmatpush.bf16.msra.mxu0 %v2316
        %2458 = vmatmul.bf16.gmra.mxu0 %v2016
        %v2459 = vpop.f32.mrf.mxu0
        %v2460 = vadd.f32 %v2447, %v2459
        %v2461 = vpop.f32.mrf.mxu0
        %2462 = vdwg.mxu0
        %2463 = vmatpush.bf16.msra.mxu0 %v2313
        %2464 = vmatpush.bf16.msra.mxu0 %v2309
        %2465 = vmatpush.bf16.msra.mxu0 %v2305
        %2466 = vmatpush.bf16.msra.mxu0 %v2301
        %2467 = vmatpush.bf16.msra.mxu0 %v2297
        %2468 = vmatpush.bf16.msra.mxu0 %v2293
        %2469 = vmatpush.bf16.msra.mxu0 %v2289
        %2470 = vmatpush.bf16.msra.mxu0 %v2285
        %2471 = vmatmul.bf16.gmra.mxu0 %v2014
        %v2472 = vpop.f32.mrf.mxu0
        %v2473 = vadd.f32 %v2085, %v2472
        %v2474 = vpop.f32.mrf.mxu0
        %2475 = vdwg.mxu0
        %2476 = vmatpush.bf16.msra.mxu0 %v2345
        %2477 = vmatpush.bf16.msra.mxu0 %v2341
        %2478 = vmatpush.bf16.msra.mxu0 %v2337
        %2479 = vmatpush.bf16.msra.mxu0 %v2333
        %2480 = vmatpush.bf16.msra.mxu0 %v2329
        %2481 = vmatpush.bf16.msra.mxu0 %v2325
        %2482 = vmatpush.bf16.msra.mxu0 %v2321
        %2483 = vmatpush.bf16.msra.mxu0 %v2317
        %2484 = vmatmul.bf16.gmra.mxu0 %v2016
        %v2485 = vpop.f32.mrf.mxu0
        %v2486 = vadd.f32 %v2473, %v2485
        %v2487 = vpop.f32.mrf.mxu0
        %2488 = vdwg.mxu0
        %2489 = vmatpush.bf16.msra.mxu0 %v2314
        %2490 = vmatpush.bf16.msra.mxu0 %v2310
        %2491 = vmatpush.bf16.msra.mxu0 %v2306
        %2492 = vmatpush.bf16.msra.mxu0 %v2302
        %2493 = vmatpush.bf16.msra.mxu0 %v2298
        %2494 = vmatpush.bf16.msra.mxu0 %v2294
        %2495 = vmatpush.bf16.msra.mxu0 %v2290
        %2496 = vmatpush.bf16.msra.mxu0 %v2286
        %2497 = vmatmul.bf16.gmra.mxu0 %v2014
        %v2498 = vpop.f32.mrf.mxu0
        %v2499 = vadd.f32 %v2086, %v2498
        %v2500 = vpop.f32.mrf.mxu0
        %2501 = vdwg.mxu0
        %2502 = vmatpush.bf16.msra.mxu0 %v2346
        %2503 = vmatpush.bf16.msra.mxu0 %v2342
        %2504 = vmatpush.bf16.msra.mxu0 %v2338
        %2505 = vmatpush.bf16.msra.mxu0 %v2334
        %2506 = vmatpush.bf16.msra.mxu0 %v2330
        %2507 = vmatpush.bf16.msra.mxu0 %v2326
        %2508 = vmatpush.bf16.msra.mxu0 %v2322
        %2509 = vmatpush.bf16.msra.mxu0 %v2318
        %2510 = vmatmul.bf16.gmra.mxu0 %v2016
        %v2511 = vpop.f32.mrf.mxu0
        %v2512 = vadd.f32 %v2499, %v2511
        %v2513 = vpop.f32.mrf.mxu0
        %2514 = vdwg.mxu0
        %v2515 = vxor.u32 %v2434, 2147483648
        %v2516 = vmul.f32 %v2515, 1.442695
        %v2517 = vpow.pop %v2516
        %v2518 = vadd.f32 %v2517, 1.0
        %v2519 = vrcp.pop %v2518
        %v2520 = vmul.f32 %v2518, %v2519
        %v2521 = vsub.f32 1.0, %v2520
        %v2522 = vmul.f32 %v2519, %v2521
        %v2523 = vadd.f32 %v2519, %v2522
        %vm2524 = vweird.f32 %v2518
        %vm2525 = vweird.f32 %v2519
        %vm2526 = vmor %vm2524, %vm2525
        %v2527 = vsel %vm2526, %v2519, %v2523
        %v2528 = vand.u32 2147483647, %v2518
        %vm2529 = vcmp.eq.f32.partialorder %v2528, 8.507059e+37
        %v2530 = vand.u32 %v2518, 2147483648
        %v2531 = vor.u32 1.1754944e-38, %v2530
        %v2532 = vsel %vm2529, %v2531, %v2527
        %v2533 = vmul.f32 1.0, %v2532
        %v2534 = vxor.u32 %v2460, 2147483648
        %v2535 = vmul.f32 %v2534, 1.442695
        %v2536 = vpow.pop %v2535
        %v2537 = vadd.f32 %v2536, 1.0
        %v2538 = vrcp.pop %v2537
        %v2539 = vmul.f32 %v2537, %v2538
        %v2540 = vsub.f32 1.0, %v2539
        %v2541 = vmul.f32 %v2538, %v2540
        %v2542 = vadd.f32 %v2538, %v2541
        %vm2543 = vweird.f32 %v2537
        %vm2544 = vweird.f32 %v2538
        %vm2545 = vmor %vm2543, %vm2544
        %v2546 = vsel %vm2545, %v2538, %v2542
        %v2547 = vand.u32 2147483647, %v2537
        %vm2548 = vcmp.eq.f32.partialorder %v2547, 8.507059e+37
        %v2549 = vand.u32 %v2537, 2147483648
        %v2550 = vor.u32 1.1754944e-38, %v2549
        %v2551 = vsel %vm2548, %v2550, %v2546
        %v2552 = vmul.f32 1.0, %v2551
        %v2553 = vtanh.pop %v2486
        %v2554 = vxor.u32 %v2512, 2147483648
        %v2555 = vmul.f32 %v2554, 1.442695
        %v2556 = vpow.pop %v2555
        %v2557 = vadd.f32 %v2556, 1.0
        %v2558 = vrcp.pop %v2557
        %v2559 = vmul.f32 %v2557, %v2558
        %v2560 = vsub.f32 1.0, %v2559
        %v2561 = vmul.f32 %v2558, %v2560
        %v2562 = vadd.f32 %v2558, %v2561
        %vm2563 = vweird.f32 %v2557
        %vm2564 = vweird.f32 %v2558
        %vm2565 = vmor %vm2563, %vm2564
        %v2566 = vsel %vm2565, %v2558, %v2562
        %v2567 = vand.u32 2147483647, %v2557
        %vm2568 = vcmp.eq.f32.partialorder %v2567, 8.507059e+37
        %v2569 = vand.u32 %v2557, 2147483648
        %v2570 = vor.u32 1.1754944e-38, %v2569
        %v2571 = vsel %vm2568, %v2570, %v2566
        %v2572 = vmul.f32 1.0, %v2571
        %v2573 = vld [vmem:[#allocation3] sm:$0xff]
        %v2574 = vmul.f32 %v2552, %v2573
        %v2575 = vmul.f32 %v2533, %v2553
        %v2576 = vadd.f32 %v2574, %v2575
        %v2577 = vtanh.pop %v2576
        %v2578 = vmul.f32 %v2572, %v2577
        %2579 = vst [vmem:[#allocation3] sm:$0xff] %v2576
        %2580 = vst [vmem:[#allocation2] sm:$0xff] %v2578
        %v2581 = vpack.c.bf16 %v2578, %v2578
        %s2582 = scalar_lea.vmem %s292, 12
        %2583 = vst [vmem:[%s2582] sm:$0xf] %v2581
        %p2584 = scmp.eq.s32.totalorder %s20, 1
        // Predicated region
        $region49: #{rnn_model_forward.3} parent=39 // pred_check
          %p2585 = pneg %p2584
        $region50: #{rnn_model_forward.3} parent=39 // pred_check_branch
          %2587 = sbr.rel (%p2585) target = $region52
        $region51: #{rnn_model_forward.3} parent=39 // pred_region
          %v2588 = vld [vmem:[#allocation2] sm:$0xff]
          %2589 = vst [vmem:[%s6] sm:$0xff] %v2588
          %v2590 = vld [vmem:[#allocation3] sm:$0xff]
          %2591 = vst [vmem:[%s7] sm:$0xff] %v2590
        $region52: #{rnn_model_forward.3} parent=39 // pred_fallthru
          _
        %s2592 = smul.u32 4, %s20
        %p2593 = scmp.lt.s32.totalorder %s2592, 7
        %s2594 = scalar_select %p2593, %s2592, 7
        %s2595 = smul.addr %s2594, 4
        %s2596 = scalar_lea.vmem %s5, %s2595
        // Predicated region
        $region53: #{rnn_model_forward.3} parent=39 // pred_check
          %p2597 = pneg %p148
        $region54: #{rnn_model_forward.3} parent=39 // pred_check_branch
          %2599 = sbr.rel (%p2597) target = $region56
        $region55: #{rnn_model_forward.3} parent=39 // pred_region
          %s2600 = smul.u32 4, %s20
        $region56: #{rnn_model_forward.3} parent=39 // pred_fallthru
          _
        // Predicated region
        $region57: #{rnn_model_forward.3} parent=39 // pred_check
          %p2601 = pneg %p169
        $region58: #{rnn_model_forward.3} parent=39 // pred_check_branch
          %2603 = sbr.rel (%p2601) target = $region60
        $region59: #{rnn_model_forward.3} parent=39 // pred_region
          _
        $region60: #{rnn_model_forward.3} parent=39 // pred_fallthru
          _
        // Predicated region
        $region61: #{rnn_model_forward.3} parent=39 // pred_check
          %p2604 = pneg %p190
        $region62: #{rnn_model_forward.3} parent=39 // pred_check_branch
          %2606 = sbr.rel (%p2604) target = $region64
        $region63: #{rnn_model_forward.3} parent=39 // pred_region
          _
        $region64: #{rnn_model_forward.3} parent=39 // pred_fallthru
          _
        // Predicated region
        $region65: #{rnn_model_forward.3} parent=39 // pred_check
          %p2607 = pneg %p169
        $region66: #{rnn_model_forward.3} parent=39 // pred_check_branch
          %2609 = sbr.rel (%p2607) target = $region68
        $region67: #{rnn_model_forward.3} parent=39 // pred_region
          _
        $region68: #{rnn_model_forward.3} parent=39 // pred_fallthru
          _
        // Predicated region
        $region69: #{rnn_model_forward.3} parent=39 // pred_check
          %p2610 = pneg %p190
        $region70: #{rnn_model_forward.3} parent=39 // pred_check_branch
          %2612 = sbr.rel (%p2610) target = $region72
        $region71: #{rnn_model_forward.3} parent=39 // pred_region
          _
        $region72: #{rnn_model_forward.3} parent=39 // pred_fallthru
          _
      $region40: #{rnn_model_forward.3} parent=5 // pred_fallthru
        _
      %p2613 = scmp.le.s32.totalorder 2, %s15
      // Predicated region
      $region73: #{rnn_model_forward.3} parent=5 // pred_check
        %p2614 = pneg %p2613
      $region74: #{rnn_model_forward.3} parent=5 // pred_check_branch
        %2616 = sbr.rel (%p2614) target = $region76
      $region75: #{rnn_model_forward.3} parent=5 // pred_region
        %s2617 = ssub.s32 %s15, 2
        // Predicated region
        $region77: #{rnn_model_forward.3} parent=75 // pred_check
          %p2618 = pneg %p154
        $region78: #{rnn_model_forward.3} parent=75 // pred_check_branch
          %2620 = sbr.rel (%p2618) target = $region80
        $region79: #{rnn_model_forward.3} parent=75 // pred_region
          %s2621 = smul.u32 4, %s21
          %p2622 = scmp.lt.s32.totalorder %s2621, 7
          %s2623 = scalar_select %p2622, %s2621, 7
          %s2624 = smul.addr %s2623, 4
          %s2625 = scalar_lea.vmem %s5, %s2624
        $region80: #{rnn_model_forward.3} parent=75 // pred_fallthru
          _
      $region76: #{rnn_model_forward.3} parent=5 // pred_fallthru
        _
    $region6: #{rnn_model_forward.3} parent=1 // loop_footer
      %s19 = sadd.s32 1, %s15
    $region7: #{rnn_model_forward.3} parent=1 // loop_footer_branch
      %14 = sbr.rel target = $region3
    $region8: #{rnn_model_forward.3} parent=1 // loop_exit
      _
    %2626 = vsyncpa [#allocation5], 1
    %s2627 = scalar_lea.sflag [#allocation5], 1
    %2628 = vsyncpa %s2627, 1

</llo_original>
